<compile_context>
chip_gen: v7x
topology: tpu7x:2x2x1
jax: 0.10.0
libtpu: 0.0.40
codegen_flags: <defaults>
</compile_context>

<pallas_src>
import functools

import jax
import jax.numpy as jnp
from jax import lax
from jax.experimental import pallas as pl
from jax.experimental.pallas import tpu as pltpu


def _round_up(x, m):
    return (x + m - 1) // m * m


def _residual_block_kernel(x_ref, m_ref, w1_ref, t1_ref, w2_ref, t2_ref, o_ref,
                           *, W, Sp, Nb, compute_dtype):
    # x_ref:  (Nb, Cp, Sp) f32   images, channels-first, spatial flattened (lanes)
    # m_ref:  (9, 1, Sp)  compute_dtype  per-tap border/pad validity masks
    # w*_ref: (9, Cp, Cp) compute_dtype  folded conv weights, one (Cout,Cin) per tap
    # t*_ref: (Cp, 1)     f32            folded shift = bias*scale + beta - mean*scale
    # o_ref:  (Nb, Cp, Sp) f32
    masks = m_ref[...]                        # (9, 1, Sp)

    def conv3x3(a, w_ref):
        # 3x3 SAME conv as nine accumulated MXU dots (K = Cp each).  Centre tap
        # first (no roll, no mask); the 8 shifted taps are gathered with lane
        # rolls (XLU slot) and zeroed at the image border / spatial pad by the
        # precomputed masks (VPU), then fed to the MXU with f32 accumulation.
        acc = jnp.dot(w_ref[4], a, preferred_element_type=jnp.float32)
        for t in range(9):
            if t == 4:
                continue
            dy, dx = t // 3, t % 3
            off = (dy - 1) * W + (dx - 1)          # flat spatial offset of this tap
            shifted = pltpu.roll(a, shift=(-off) % Sp, axis=1)
            tap = shifted * masks[t]               # stays in compute_dtype
            acc = acc + jnp.dot(w_ref[t], tap, preferred_element_type=jnp.float32)
        return acc

    # Nb is a small static batch block chosen by the wrapper.
    for n in range(Nb):
        x32 = x_ref[n]                             # (Cp, Sp) f32
        xc = x32.astype(compute_dtype)             # cast ONCE before the tap loop
        # conv1 (+bias) -> BN1 -> ReLU      (bias/BN folded into w1/t1)
        h = jnp.maximum(conv3x3(xc, w1_ref) + t1_ref[...], 0.0)
        # conv2 (+bias) -> BN2 -> +x -> ReLU (residual read straight from input, f32)
        out = jnp.maximum(conv3x3(h.astype(compute_dtype), w2_ref)
                          + t2_ref[...] + x32, 0.0)
        o_ref[n] = out.astype(o_ref.dtype)


def residual_block(x_nchw,
                   w1_oihw, b1, g1, be1, rm1, rv1,
                   w2_oihw, b2, g2, be2, rm2, rv2,
                   *, eps=1e-5, compute_dtype=jnp.bfloat16, batch_block=None):
    """x_nchw: (N, C, H, W) float32 (PyTorch layout). Conv weights OIHW.
    BatchNorm params are (gamma, beta, running_mean, running_var) -> eval mode.
    compute_dtype: dtype of the MXU operands (bf16 default; f32 accumulation)."""
    N, C, H, W = x_nchw.shape
    S = H * W
    assert w1_oihw.shape == (C, C, 3, 3) and w2_oihw.shape == (C, C, 3, 3)

    # Pad channels to the sublane granule of the compute dtype (8 for f32,
    # 16 for bf16) and the flattened spatial axis to a lane multiple (128).
    sub = 32 // jnp.dtype(compute_dtype).itemsize
    Cp = _round_up(C, sub)
    Sp = _round_up(S, 128)

    def fold(w_oihw, b, g, be, rm, rv):
        # BN(conv(x) + b) = conv(x, w*scale) + (b*scale + beta - mean*scale)
        scale = g / jnp.sqrt(rv + eps)                           # (Cout,) f32
        w = w_oihw * scale[:, None, None, None]                  # (Co,Ci,3,3)
        # -> (9, Cout, Cin), tap-major (kh,kw); zero-pad channels to Cp.
        w9 = jnp.transpose(w, (2, 3, 0, 1)).reshape(9, C, C)
        w9 = jnp.pad(w9, ((0, 0), (0, Cp - C), (0, Cp - C)))
        shift = jnp.pad(b * scale + be - rm * scale, (0, Cp - C)).reshape(Cp, 1)
        return w9.astype(compute_dtype), shift.astype(jnp.float32)

    w9_1, t1 = fold(w1_oihw, b1, g1, be1, rm1, rv1)
    w9_2, t2 = fold(w2_oihw, b2, g2, be2, rm2, rv2)

    # Per-tap validity masks (compute dtype): 1.0 where the tap reads inside the
    # image, 0.0 where a padding=1 conv would read zeros; spatial pad is 0 too.
    hh = jnp.arange(H)[:, None]
    ww = jnp.arange(W)[None, :]
    mask_list = []
    for dy in range(3):
        for dx in range(3):
            valid = ((hh + dy - 1 >= 0) & (hh + dy - 1 < H) &
                     (ww + dx - 1 >= 0) & (ww + dx - 1 < W)).reshape(S)
            mask_list.append(jnp.pad(valid.astype(compute_dtype), (0, Sp - S)))
    masks = jnp.stack(mask_list, axis=0).reshape(9, 1, Sp)

    # NCHW is contiguous with H,W innermost -> the reshape is free; the channel /
    # spatial zero-pad is a single cheap wrapper-side op (no-op when aligned).
    x_flat = jnp.pad(x_nchw.reshape(N, C, S),
                     ((0, 0), (0, Cp - C), (0, Sp - S)))

    # Batch block per grid step: target ~1 MiB of activations to amortize the
    # ~0.35us per-step overhead, but keep >=2 grid steps when N >= 2 so both
    # v7x TensorCores get work (no-op on v5e/v6e's single TC).
    if batch_block is None:
        per_img = Cp * Sp * 4
        nb = max(1, min(N, (1 << 20) // max(per_img, 1)))
        if N >= 2:
            nb = min(nb, max(1, N // 2))
        while N % nb:
            nb -= 1
        batch_block = nb
    Nb = batch_block
    assert N % Nb == 0, "batch_block must divide N"

    kernel = functools.partial(_residual_block_kernel, W=W, Sp=Sp, Nb=Nb,
                               compute_dtype=compute_dtype)

    # NOTE: for production H*W a spatial row-block grid axis is needed; each
    # block must then carry a 1-row halo (rolls wrap within the tile, not the
    # image) and the tile should be sized against v7x's 64 MiB VMEM.
    out_flat = pl.pallas_call(
        kernel,
        out_shape=jax.ShapeDtypeStruct((N, Cp, Sp), x_nchw.dtype),
        grid_spec=pltpu.PrefetchScalarGridSpec(
            num_scalar_prefetch=0,
            grid=(N // Nb,),
            in_specs=[
                pl.BlockSpec((Nb, Cp, Sp), lambda b: (b, 0, 0)),   # x (batch block)
                pl.BlockSpec((9, 1, Sp), lambda b: (0, 0, 0)),     # border masks
                pl.BlockSpec((9, Cp, Cp), lambda b: (0, 0, 0)),    # folded w1 (per tap)
                pl.BlockSpec((Cp, 1), lambda b: (0, 0)),           # folded shift1
                pl.BlockSpec((9, Cp, Cp), lambda b: (0, 0, 0)),    # folded w2 (per tap)
                pl.BlockSpec((Cp, 1), lambda b: (0, 0)),           # folded shift2
            ],
            out_specs=pl.BlockSpec((Nb, Cp, Sp), lambda b: (b, 0, 0)),
        ),
        compiler_params=pltpu.CompilerParams(
            dimension_semantics=("parallel",),
            vmem_limit_bytes=48 << 20,   # explicit budget; safe on v7x's 64 MiB VMEM
        ),
    )(x_flat, masks, w9_1, t1, w9_2, t2)

    return out_flat[:, :C, :S].reshape(N, C, H, W)


def _reference(x, w1, b1, g1, be1, rm1, rv1, w2, b2, g2, be2, rm2, rv2, eps):
    dn = ('NCHW', 'OIHW', 'NCHW')

    def bn(h, g, be, rm, rv):
        g, be, rm, rv = (v.reshape(1, -1, 1, 1) for v in (g, be, rm, rv))
        return (h - rm) / jnp.sqrt(rv + eps) * g + be

    h = lax.conv_general_dilated(x, w1, (1, 1), 'SAME', dimension_numbers=dn)
    h = jnp.maximum(bn(h + b1.reshape(1, -1, 1, 1), g1, be1, rm1, rv1), 0.0)
    o = lax.conv_general_dilated(h, w2, (1, 1), 'SAME', dimension_numbers=dn)
    o = bn(o + b2.reshape(1, -1, 1, 1), g2, be2, rm2, rv2)
    return jnp.maximum(o + x, 0.0)


if __name__ == "__main__":
    N, C, H, W = 2, 4, 16, 16          # in_channels == out_channels == 4
    eps = 1e-5

    key = jax.random.PRNGKey(0)
    ks = jax.random.split(key, 13)

    # PyTorch-style parameters (conv weights OIHW, BN gamma/beta/running stats).
    w1 = 0.1 * jax.random.normal(ks[0], (C, C, 3, 3), jnp.float32)
    b1 = 0.1 * jax.random.normal(ks[1], (C,), jnp.float32)
    w2 = 0.1 * jax.random.normal(ks[2], (C, C, 3, 3), jnp.float32)
    b2 = 0.1 * jax.random.normal(ks[3], (C,), jnp.float32)
    g1 = 1.0 + 0.1 * jax.random.normal(ks[4], (C,), jnp.float32)
    be1 = 0.1 * jax.random.normal(ks[5], (C,), jnp.float32)
    rm1 = 0.1 * jax.random.normal(ks[6], (C,), jnp.float32)
    rv1 = jnp.abs(jax.random.normal(ks[7], (C,), jnp.float32)) + 0.5
    g2 = 1.0 + 0.1 * jax.random.normal(ks[8], (C,), jnp.float32)
    be2 = 0.1 * jax.random.normal(ks[9], (C,), jnp.float32)
    rm2 = 0.1 * jax.random.normal(ks[10], (C,), jnp.float32)
    rv2 = jnp.abs(jax.random.normal(ks[11], (C,), jnp.float32)) + 0.5

    x = jax.random.normal(ks[12], (N, C, H, W), jnp.float32)   # NCHW, like PyTorch

    ref = _reference(x, w1, b1, g1, be1, rm1, rv1, w2, b2, g2, be2, rm2, rv2, eps)

    # f32 MXU path (tight check).
    out_f32 = residual_block(x, w1, b1, g1, be1, rm1, rv1,
                             w2, b2, g2, be2, rm2, rv2,
                             eps=eps, compute_dtype=jnp.float32)
    out_f32 = jax.block_until_ready(out_f32)
    assert out_f32.shape == (N, C, H, W)
    assert jnp.allclose(out_f32, ref, atol=1e-4, rtol=1e-4), "f32 kernel mismatch vs reference"

    # Default bf16 MXU path (f32 accumulation), looser tolerance.
    out_bf16 = residual_block(x, w1, b1, g1, be1, rm1, rv1,
                              w2, b2, g2, be2, rm2, rv2, eps=eps)
    out_bf16 = jax.block_until_ready(out_bf16)
    assert out_bf16.shape == (N, C, H, W)
    assert jnp.allclose(out_bf16, ref, atol=5e-2, rtol=5e-2), "bf16 kernel mismatch vs reference"

    # TODO(synk): training-mode BatchNorm (batch statistics) not implemented; eval-mode semantics used.
    print("KERNEL_OK")
</pallas_src>

<mosaic_0001>
module attributes {stable_mosaic.version = 11 : i64} {
  func.func @_residual_block_kernel(%arg0: i32, %arg1: memref<1x8x256xf32, #tpu.memory_space<vmem>>, %arg2: memref<9x1x256xf32, #tpu.memory_space<vmem>>, %arg3: memref<9x8x8xf32, #tpu.memory_space<vmem>>, %arg4: memref<8x1xf32, #tpu.memory_space<vmem>>, %arg5: memref<9x8x8xf32, #tpu.memory_space<vmem>>, %arg6: memref<8x1xf32, #tpu.memory_space<vmem>>, %arg7: memref<1x8x256xf32, #tpu.memory_space<vmem>>) attributes {dimension_semantics = [#tpu.dimension_semantics<parallel>], iteration_bounds = array<i64: 2>, scalar_prefetch = 0 : i64, scratch_operands = 0 : i64, tpu.core_type = #tpu.core_type<tc>, window_params = [{transform_indices = @transform_0, window_bounds = array<i64: 1, 8, 256>}, {pipeline_mode = #tpu.pipeline_mode<synchronous>, transform_indices = @transform_1, window_bounds = array<i64: 9, 1, 256>}, {pipeline_mode = #tpu.pipeline_mode<synchronous>, transform_indices = @transform_2, window_bounds = array<i64: 9, 8, 8>}, {pipeline_mode = #tpu.pipeline_mode<synchronous>, transform_indices = @transform_3, window_bounds = array<i64: 8, 1>}, {pipeline_mode = #tpu.pipeline_mode<synchronous>, transform_indices = @transform_4, window_bounds = array<i64: 9, 8, 8>}, {pipeline_mode = #tpu.pipeline_mode<synchronous>, transform_indices = @transform_5, window_bounds = array<i64: 8, 1>}, {transform_indices = @transform_6, window_bounds = array<i64: 1, 8, 256>}]} {
    %c0 = arith.constant 0 : index
    %c0_0 = arith.constant 0 : index
    %c0_1 = arith.constant 0 : index
    %0 = vector.load %arg2[%c0, %c0_0, %c0_1] : memref<9x1x256xf32, #tpu.memory_space<vmem>>, vector<9x1x256xf32>
    %c0_2 = arith.constant 0 : index
    %c0_3 = arith.constant 0 : index
    %c0_4 = arith.constant 0 : index
    %1 = vector.load %arg1[%c0_2, %c0_3, %c0_4] : memref<1x8x256xf32, #tpu.memory_space<vmem>>, vector<1x8x256xf32>
    %2 = vector.shape_cast %1 : vector<1x8x256xf32> to vector<8x256xf32>
    %c4 = arith.constant 4 : index
    %c0_5 = arith.constant 0 : index
    %c0_6 = arith.constant 0 : index
    %3 = vector.load %arg3[%c4, %c0_5, %c0_6] : memref<9x8x8xf32, #tpu.memory_space<vmem>>, vector<1x8x8xf32>
    %4 = vector.shape_cast %3 : vector<1x8x8xf32> to vector<8x8xf32>
    %cst = arith.constant dense<0.000000e+00> : vector<8x256xf32>
    %5 = tpu.matmul %4, %2, %cst {dimension_numbers = #tpu.dot_dimension_numbers<[1], [0], [0], [1], [0, 0, 1, 1], [], []>} : vector<8x8xf32>, vector<8x256xf32>, vector<8x256xf32> -> vector<8x256xf32>
    %c17_i32 = arith.constant 17 : i32
    %6 = tpu.dynamic_rotate %2 by %c17_i32 dim 1 : vector<8x256xf32>, i32 -> vector<8x256xf32>
    %7 = vector.extract_strided_slice %0 {offsets = [0, 0, 0], sizes = [1, 1, 256], strides = [1, 1, 1]} : vector<9x1x256xf32> to vector<1x1x256xf32>
    %8 = vector.shape_cast %7 : vector<1x1x256xf32> to vector<1x256xf32>
    %9 = vector.broadcast %8 : vector<1x256xf32> to vector<8x256xf32>
    %10 = arith.mulf %6, %9 : vector<8x256xf32>
    %c0_7 = arith.constant 0 : index
    %c0_8 = arith.constant 0 : index
    %c0_9 = arith.constant 0 : index
    %11 = vector.load %arg3[%c0_7, %c0_8, %c0_9] : memref<9x8x8xf32, #tpu.memory_space<vmem>>, vector<1x8x8xf32>
    %12 = vector.shape_cast %11 : vector<1x8x8xf32> to vector<8x8xf32>
    %cst_10 = arith.constant dense<0.000000e+00> : vector<8x256xf32>
    %13 = tpu.matmul %12, %10, %cst_10 {dimension_numbers = #tpu.dot_dimension_numbers<[1], [0], [0], [1], [0, 0, 1, 1], [], []>} : vector<8x8xf32>, vector<8x256xf32>, vector<8x256xf32> -> vector<8x256xf32>
    %14 = arith.addf %5, %13 : vector<8x256xf32>
    %c16_i32 = arith.constant 16 : i32
    %15 = tpu.dynamic_rotate %2 by %c16_i32 dim 1 : vector<8x256xf32>, i32 -> vector<8x256xf32>
    %16 = vector.extract_strided_slice %0 {offsets = [1, 0, 0], sizes = [1, 1, 256], strides = [1, 1, 1]} : vector<9x1x256xf32> to vector<1x1x256xf32>
    %17 = vector.shape_cast %16 : vector<1x1x256xf32> to vector<1x256xf32>
    %18 = vector.broadcast %17 : vector<1x256xf32> to vector<8x256xf32>
    %19 = arith.mulf %15, %18 : vector<8x256xf32>
    %c1 = arith.constant 1 : index
    %c0_11 = arith.constant 0 : index
    %c0_12 = arith.constant 0 : index
    %20 = vector.load %arg3[%c1, %c0_11, %c0_12] : memref<9x8x8xf32, #tpu.memory_space<vmem>>, vector<1x8x8xf32>
    %21 = vector.shape_cast %20 : vector<1x8x8xf32> to vector<8x8xf32>
    %cst_13 = arith.constant dense<0.000000e+00> : vector<8x256xf32>
    %22 = tpu.matmul %21, %19, %cst_13 {dimension_numbers = #tpu.dot_dimension_numbers<[1], [0], [0], [1], [0, 0, 1, 1], [], []>} : vector<8x8xf32>, vector<8x256xf32>, vector<8x256xf32> -> vector<8x256xf32>
    %23 = arith.addf %14, %22 : vector<8x256xf32>
    %c15_i32 = arith.constant 15 : i32
    %24 = tpu.dynamic_rotate %2 by %c15_i32 dim 1 : vector<8x256xf32>, i32 -> vector<8x256xf32>
    %25 = vector.extract_strided_slice %0 {offsets = [2, 0, 0], sizes = [1, 1, 256], strides = [1, 1, 1]} : vector<9x1x256xf32> to vector<1x1x256xf32>
    %26 = vector.shape_cast %25 : vector<1x1x256xf32> to vector<1x256xf32>
    %27 = vector.broadcast %26 : vector<1x256xf32> to vector<8x256xf32>
    %28 = arith.mulf %24, %27 : vector<8x256xf32>
    %c2 = arith.constant 2 : index
    %c0_14 = arith.constant 0 : index
    %c0_15 = arith.constant 0 : index
    %29 = vector.load %arg3[%c2, %c0_14, %c0_15] : memref<9x8x8xf32, #tpu.memory_space<vmem>>, vector<1x8x8xf32>
    %30 = vector.shape_cast %29 : vector<1x8x8xf32> to vector<8x8xf32>
    %cst_16 = arith.constant dense<0.000000e+00> : vector<8x256xf32>
    %31 = tpu.matmul %30, %28, %cst_16 {dimension_numbers = #tpu.dot_dimension_numbers<[1], [0], [0], [1], [0, 0, 1, 1], [], []>} : vector<8x8xf32>, vector<8x256xf32>, vector<8x256xf32> -> vector<8x256xf32>
    %32 = arith.addf %23, %31 : vector<8x256xf32>
    %c1_i32 = arith.constant 1 : i32
    %33 = tpu.dynamic_rotate %2 by %c1_i32 dim 1 : vector<8x256xf32>, i32 -> vector<8x256xf32>
    %34 = vector.extract_strided_slice %0 {offsets = [3, 0, 0], sizes = [1, 1, 256], strides = [1, 1, 1]} : vector<9x1x256xf32> to vector<1x1x256xf32>
    %35 = vector.shape_cast %34 : vector<1x1x256xf32> to vector<1x256xf32>
    %36 = vector.broadcast %35 : vector<1x256xf32> to vector<8x256xf32>
    %37 = arith.mulf %33, %36 : vector<8x256xf32>
    %c3 = arith.constant 3 : index
    %c0_17 = arith.constant 0 : index
    %c0_18 = arith.constant 0 : index
    %38 = vector.load %arg3[%c3, %c0_17, %c0_18] : memref<9x8x8xf32, #tpu.memory_space<vmem>>, vector<1x8x8xf32>
    %39 = vector.shape_cast %38 : vector<1x8x8xf32> to vector<8x8xf32>
    %cst_19 = arith.constant dense<0.000000e+00> : vector<8x256xf32>
    %40 = tpu.matmul %39, %37, %cst_19 {dimension_numbers = #tpu.dot_dimension_numbers<[1], [0], [0], [1], [0, 0, 1, 1], [], []>} : vector<8x8xf32>, vector<8x256xf32>, vector<8x256xf32> -> vector<8x256xf32>
    %41 = arith.addf %32, %40 : vector<8x256xf32>
    %c255_i32 = arith.constant 255 : i32
    %42 = tpu.dynamic_rotate %2 by %c255_i32 dim 1 : vector<8x256xf32>, i32 -> vector<8x256xf32>
    %43 = vector.extract_strided_slice %0 {offsets = [5, 0, 0], sizes = [1, 1, 256], strides = [1, 1, 1]} : vector<9x1x256xf32> to vector<1x1x256xf32>
    %44 = vector.shape_cast %43 : vector<1x1x256xf32> to vector<1x256xf32>
    %45 = vector.broadcast %44 : vector<1x256xf32> to vector<8x256xf32>
    %46 = arith.mulf %42, %45 : vector<8x256xf32>
    %c5 = arith.constant 5 : index
    %c0_20 = arith.constant 0 : index
    %c0_21 = arith.constant 0 : index
    %47 = vector.load %arg3[%c5, %c0_20, %c0_21] : memref<9x8x8xf32, #tpu.memory_space<vmem>>, vector<1x8x8xf32>
    %48 = vector.shape_cast %47 : vector<1x8x8xf32> to vector<8x8xf32>
    %cst_22 = arith.constant dense<0.000000e+00> : vector<8x256xf32>
    %49 = tpu.matmul %48, %46, %cst_22 {dimension_numbers = #tpu.dot_dimension_numbers<[1], [0], [0], [1], [0, 0, 1, 1], [], []>} : vector<8x8xf32>, vector<8x256xf32>, vector<8x256xf32> -> vector<8x256xf32>
    %50 = arith.addf %41, %49 : vector<8x256xf32>
    %c241_i32 = arith.constant 241 : i32
    %51 = tpu.dynamic_rotate %2 by %c241_i32 dim 1 : vector<8x256xf32>, i32 -> vector<8x256xf32>
    %52 = vector.extract_strided_slice %0 {offsets = [6, 0, 0], sizes = [1, 1, 256], strides = [1, 1, 1]} : vector<9x1x256xf32> to vector<1x1x256xf32>
    %53 = vector.shape_cast %52 : vector<1x1x256xf32> to vector<1x256xf32>
    %54 = vector.broadcast %53 : vector<1x256xf32> to vector<8x256xf32>
    %55 = arith.mulf %51, %54 : vector<8x256xf32>
    %c6 = arith.constant 6 : index
    %c0_23 = arith.constant 0 : index
    %c0_24 = arith.constant 0 : index
    %56 = vector.load %arg3[%c6, %c0_23, %c0_24] : memref<9x8x8xf32, #tpu.memory_space<vmem>>, vector<1x8x8xf32>
    %57 = vector.shape_cast %56 : vector<1x8x8xf32> to vector<8x8xf32>
    %cst_25 = arith.constant dense<0.000000e+00> : vector<8x256xf32>
    %58 = tpu.matmul %57, %55, %cst_25 {dimension_numbers = #tpu.dot_dimension_numbers<[1], [0], [0], [1], [0, 0, 1, 1], [], []>} : vector<8x8xf32>, vector<8x256xf32>, vector<8x256xf32> -> vector<8x256xf32>
    %59 = arith.addf %50, %58 : vector<8x256xf32>
    %c240_i32 = arith.constant 240 : i32
    %60 = tpu.dynamic_rotate %2 by %c240_i32 dim 1 : vector<8x256xf32>, i32 -> vector<8x256xf32>
    %61 = vector.extract_strided_slice %0 {offsets = [7, 0, 0], sizes = [1, 1, 256], strides = [1, 1, 1]} : vector<9x1x256xf32> to vector<1x1x256xf32>
    %62 = vector.shape_cast %61 : vector<1x1x256xf32> to vector<1x256xf32>
    %63 = vector.broadcast %62 : vector<1x256xf32> to vector<8x256xf32>
    %64 = arith.mulf %60, %63 : vector<8x256xf32>
    %c7 = arith.constant 7 : index
    %c0_26 = arith.constant 0 : index
    %c0_27 = arith.constant 0 : index
    %65 = vector.load %arg3[%c7, %c0_26, %c0_27] : memref<9x8x8xf32, #tpu.memory_space<vmem>>, vector<1x8x8xf32>
    %66 = vector.shape_cast %65 : vector<1x8x8xf32> to vector<8x8xf32>
    %cst_28 = arith.constant dense<0.000000e+00> : vector<8x256xf32>
    %67 = tpu.matmul %66, %64, %cst_28 {dimension_numbers = #tpu.dot_dimension_numbers<[1], [0], [0], [1], [0, 0, 1, 1], [], []>} : vector<8x8xf32>, vector<8x256xf32>, vector<8x256xf32> -> vector<8x256xf32>
    %68 = arith.addf %59, %67 : vector<8x256xf32>
    %c239_i32 = arith.constant 239 : i32
    %69 = tpu.dynamic_rotate %2 by %c239_i32 dim 1 : vector<8x256xf32>, i32 -> vector<8x256xf32>
    %70 = vector.extract_strided_slice %0 {offsets = [8, 0, 0], sizes = [1, 1, 256], strides = [1, 1, 1]} : vector<9x1x256xf32> to vector<1x1x256xf32>
    %71 = vector.shape_cast %70 : vector<1x1x256xf32> to vector<1x256xf32>
    %72 = vector.broadcast %71 : vector<1x256xf32> to vector<8x256xf32>
    %73 = arith.mulf %69, %72 : vector<8x256xf32>
    %c8 = arith.constant 8 : index
    %c0_29 = arith.constant 0 : index
    %c0_30 = arith.constant 0 : index
    %74 = vector.load %arg3[%c8, %c0_29, %c0_30] : memref<9x8x8xf32, #tpu.memory_space<vmem>>, vector<1x8x8xf32>
    %75 = vector.shape_cast %74 : vector<1x8x8xf32> to vector<8x8xf32>
    %cst_31 = arith.constant dense<0.000000e+00> : vector<8x256xf32>
    %76 = tpu.matmul %75, %73, %cst_31 {dimension_numbers = #tpu.dot_dimension_numbers<[1], [0], [0], [1], [0, 0, 1, 1], [], []>} : vector<8x8xf32>, vector<8x256xf32>, vector<8x256xf32> -> vector<8x256xf32>
    %77 = arith.addf %68, %76 : vector<8x256xf32>
    %c0_32 = arith.constant 0 : index
    %c0_33 = arith.constant 0 : index
    %78 = vector.load %arg4[%c0_32, %c0_33] : memref<8x1xf32, #tpu.memory_space<vmem>>, vector<8x1xf32>
    %79 = vector.broadcast %78 : vector<8x1xf32> to vector<8x256xf32>
    %80 = arith.addf %77, %79 : vector<8x256xf32>
    %cst_34 = arith.constant 0.000000e+00 : f32
    %81 = vector.broadcast %cst_34 : f32 to vector<8x256xf32>
    %82 = arith.maximumf %80, %81 : vector<8x256xf32>
    %c4_35 = arith.constant 4 : index
    %c0_36 = arith.constant 0 : index
    %c0_37 = arith.constant 0 : index
    %83 = vector.load %arg5[%c4_35, %c0_36, %c0_37] : memref<9x8x8xf32, #tpu.memory_space<vmem>>, vector<1x8x8xf32>
    %84 = vector.shape_cast %83 : vector<1x8x8xf32> to vector<8x8xf32>
    %cst_38 = arith.constant dense<0.000000e+00> : vector<8x256xf32>
    %85 = tpu.matmul %84, %82, %cst_38 {dimension_numbers = #tpu.dot_dimension_numbers<[1], [0], [0], [1], [0, 0, 1, 1], [], []>} : vector<8x8xf32>, vector<8x256xf32>, vector<8x256xf32> -> vector<8x256xf32>
    %c17_i32_39 = arith.constant 17 : i32
    %86 = tpu.dynamic_rotate %82 by %c17_i32_39 dim 1 : vector<8x256xf32>, i32 -> vector<8x256xf32>
    %87 = vector.extract_strided_slice %0 {offsets = [0, 0, 0], sizes = [1, 1, 256], strides = [1, 1, 1]} : vector<9x1x256xf32> to vector<1x1x256xf32>
    %88 = vector.shape_cast %87 : vector<1x1x256xf32> to vector<1x256xf32>
    %89 = vector.broadcast %88 : vector<1x256xf32> to vector<8x256xf32>
    %90 = arith.mulf %86, %89 : vector<8x256xf32>
    %c0_40 = arith.constant 0 : index
    %c0_41 = arith.constant 0 : index
    %c0_42 = arith.constant 0 : index
    %91 = vector.load %arg5[%c0_40, %c0_41, %c0_42] : memref<9x8x8xf32, #tpu.memory_space<vmem>>, vector<1x8x8xf32>
    %92 = vector.shape_cast %91 : vector<1x8x8xf32> to vector<8x8xf32>
    %cst_43 = arith.constant dense<0.000000e+00> : vector<8x256xf32>
    %93 = tpu.matmul %92, %90, %cst_43 {dimension_numbers = #tpu.dot_dimension_numbers<[1], [0], [0], [1], [0, 0, 1, 1], [], []>} : vector<8x8xf32>, vector<8x256xf32>, vector<8x256xf32> -> vector<8x256xf32>
    %94 = arith.addf %85, %93 : vector<8x256xf32>
    %c16_i32_44 = arith.constant 16 : i32
    %95 = tpu.dynamic_rotate %82 by %c16_i32_44 dim 1 : vector<8x256xf32>, i32 -> vector<8x256xf32>
    %96 = vector.extract_strided_slice %0 {offsets = [1, 0, 0], sizes = [1, 1, 256], strides = [1, 1, 1]} : vector<9x1x256xf32> to vector<1x1x256xf32>
    %97 = vector.shape_cast %96 : vector<1x1x256xf32> to vector<1x256xf32>
    %98 = vector.broadcast %97 : vector<1x256xf32> to vector<8x256xf32>
    %99 = arith.mulf %95, %98 : vector<8x256xf32>
    %c1_45 = arith.constant 1 : index
    %c0_46 = arith.constant 0 : index
    %c0_47 = arith.constant 0 : index
    %100 = vector.load %arg5[%c1_45, %c0_46, %c0_47] : memref<9x8x8xf32, #tpu.memory_space<vmem>>, vector<1x8x8xf32>
    %101 = vector.shape_cast %100 : vector<1x8x8xf32> to vector<8x8xf32>
    %cst_48 = arith.constant dense<0.000000e+00> : vector<8x256xf32>
    %102 = tpu.matmul %101, %99, %cst_48 {dimension_numbers = #tpu.dot_dimension_numbers<[1], [0], [0], [1], [0, 0, 1, 1], [], []>} : vector<8x8xf32>, vector<8x256xf32>, vector<8x256xf32> -> vector<8x256xf32>
    %103 = arith.addf %94, %102 : vector<8x256xf32>
    %c15_i32_49 = arith.constant 15 : i32
    %104 = tpu.dynamic_rotate %82 by %c15_i32_49 dim 1 : vector<8x256xf32>, i32 -> vector<8x256xf32>
    %105 = vector.extract_strided_slice %0 {offsets = [2, 0, 0], sizes = [1, 1, 256], strides = [1, 1, 1]} : vector<9x1x256xf32> to vector<1x1x256xf32>
    %106 = vector.shape_cast %105 : vector<1x1x256xf32> to vector<1x256xf32>
    %107 = vector.broadcast %106 : vector<1x256xf32> to vector<8x256xf32>
    %108 = arith.mulf %104, %107 : vector<8x256xf32>
    %c2_50 = arith.constant 2 : index
    %c0_51 = arith.constant 0 : index
    %c0_52 = arith.constant 0 : index
    %109 = vector.load %arg5[%c2_50, %c0_51, %c0_52] : memref<9x8x8xf32, #tpu.memory_space<vmem>>, vector<1x8x8xf32>
    %110 = vector.shape_cast %109 : vector<1x8x8xf32> to vector<8x8xf32>
    %cst_53 = arith.constant dense<0.000000e+00> : vector<8x256xf32>
    %111 = tpu.matmul %110, %108, %cst_53 {dimension_numbers = #tpu.dot_dimension_numbers<[1], [0], [0], [1], [0, 0, 1, 1], [], []>} : vector<8x8xf32>, vector<8x256xf32>, vector<8x256xf32> -> vector<8x256xf32>
    %112 = arith.addf %103, %111 : vector<8x256xf32>
    %c1_i32_54 = arith.constant 1 : i32
    %113 = tpu.dynamic_rotate %82 by %c1_i32_54 dim 1 : vector<8x256xf32>, i32 -> vector<8x256xf32>
    %114 = vector.extract_strided_slice %0 {offsets = [3, 0, 0], sizes = [1, 1, 256], strides = [1, 1, 1]} : vector<9x1x256xf32> to vector<1x1x256xf32>
    %115 = vector.shape_cast %114 : vector<1x1x256xf32> to vector<1x256xf32>
    %116 = vector.broadcast %115 : vector<1x256xf32> to vector<8x256xf32>
    %117 = arith.mulf %113, %116 : vector<8x256xf32>
    %c3_55 = arith.constant 3 : index
    %c0_56 = arith.constant 0 : index
    %c0_57 = arith.constant 0 : index
    %118 = vector.load %arg5[%c3_55, %c0_56, %c0_57] : memref<9x8x8xf32, #tpu.memory_space<vmem>>, vector<1x8x8xf32>
    %119 = vector.shape_cast %118 : vector<1x8x8xf32> to vector<8x8xf32>
    %cst_58 = arith.constant dense<0.000000e+00> : vector<8x256xf32>
    %120 = tpu.matmul %119, %117, %cst_58 {dimension_numbers = #tpu.dot_dimension_numbers<[1], [0], [0], [1], [0, 0, 1, 1], [], []>} : vector<8x8xf32>, vector<8x256xf32>, vector<8x256xf32> -> vector<8x256xf32>
    %121 = arith.addf %112, %120 : vector<8x256xf32>
    %c255_i32_59 = arith.constant 255 : i32
    %122 = tpu.dynamic_rotate %82 by %c255_i32_59 dim 1 : vector<8x256xf32>, i32 -> vector<8x256xf32>
    %123 = vector.extract_strided_slice %0 {offsets = [5, 0, 0], sizes = [1, 1, 256], strides = [1, 1, 1]} : vector<9x1x256xf32> to vector<1x1x256xf32>
    %124 = vector.shape_cast %123 : vector<1x1x256xf32> to vector<1x256xf32>
    %125 = vector.broadcast %124 : vector<1x256xf32> to vector<8x256xf32>
    %126 = arith.mulf %122, %125 : vector<8x256xf32>
    %c5_60 = arith.constant 5 : index
    %c0_61 = arith.constant 0 : index
    %c0_62 = arith.constant 0 : index
    %127 = vector.load %arg5[%c5_60, %c0_61, %c0_62] : memref<9x8x8xf32, #tpu.memory_space<vmem>>, vector<1x8x8xf32>
    %128 = vector.shape_cast %127 : vector<1x8x8xf32> to vector<8x8xf32>
    %cst_63 = arith.constant dense<0.000000e+00> : vector<8x256xf32>
    %129 = tpu.matmul %128, %126, %cst_63 {dimension_numbers = #tpu.dot_dimension_numbers<[1], [0], [0], [1], [0, 0, 1, 1], [], []>} : vector<8x8xf32>, vector<8x256xf32>, vector<8x256xf32> -> vector<8x256xf32>
    %130 = arith.addf %121, %129 : vector<8x256xf32>
    %c241_i32_64 = arith.constant 241 : i32
    %131 = tpu.dynamic_rotate %82 by %c241_i32_64 dim 1 : vector<8x256xf32>, i32 -> vector<8x256xf32>
    %132 = vector.extract_strided_slice %0 {offsets = [6, 0, 0], sizes = [1, 1, 256], strides = [1, 1, 1]} : vector<9x1x256xf32> to vector<1x1x256xf32>
    %133 = vector.shape_cast %132 : vector<1x1x256xf32> to vector<1x256xf32>
    %134 = vector.broadcast %133 : vector<1x256xf32> to vector<8x256xf32>
    %135 = arith.mulf %131, %134 : vector<8x256xf32>
    %c6_65 = arith.constant 6 : index
    %c0_66 = arith.constant 0 : index
    %c0_67 = arith.constant 0 : index
    %136 = vector.load %arg5[%c6_65, %c0_66, %c0_67] : memref<9x8x8xf32, #tpu.memory_space<vmem>>, vector<1x8x8xf32>
    %137 = vector.shape_cast %136 : vector<1x8x8xf32> to vector<8x8xf32>
    %cst_68 = arith.constant dense<0.000000e+00> : vector<8x256xf32>
    %138 = tpu.matmul %137, %135, %cst_68 {dimension_numbers = #tpu.dot_dimension_numbers<[1], [0], [0], [1], [0, 0, 1, 1], [], []>} : vector<8x8xf32>, vector<8x256xf32>, vector<8x256xf32> -> vector<8x256xf32>
    %139 = arith.addf %130, %138 : vector<8x256xf32>
    %c240_i32_69 = arith.constant 240 : i32
    %140 = tpu.dynamic_rotate %82 by %c240_i32_69 dim 1 : vector<8x256xf32>, i32 -> vector<8x256xf32>
    %141 = vector.extract_strided_slice %0 {offsets = [7, 0, 0], sizes = [1, 1, 256], strides = [1, 1, 1]} : vector<9x1x256xf32> to vector<1x1x256xf32>
    %142 = vector.shape_cast %141 : vector<1x1x256xf32> to vector<1x256xf32>
    %143 = vector.broadcast %142 : vector<1x256xf32> to vector<8x256xf32>
    %144 = arith.mulf %140, %143 : vector<8x256xf32>
    %c7_70 = arith.constant 7 : index
    %c0_71 = arith.constant 0 : index
    %c0_72 = arith.constant 0 : index
    %145 = vector.load %arg5[%c7_70, %c0_71, %c0_72] : memref<9x8x8xf32, #tpu.memory_space<vmem>>, vector<1x8x8xf32>
    %146 = vector.shape_cast %145 : vector<1x8x8xf32> to vector<8x8xf32>
    %cst_73 = arith.constant dense<0.000000e+00> : vector<8x256xf32>
    %147 = tpu.matmul %146, %144, %cst_73 {dimension_numbers = #tpu.dot_dimension_numbers<[1], [0], [0], [1], [0, 0, 1, 1], [], []>} : vector<8x8xf32>, vector<8x256xf32>, vector<8x256xf32> -> vector<8x256xf32>
    %148 = arith.addf %139, %147 : vector<8x256xf32>
    %c239_i32_74 = arith.constant 239 : i32
    %149 = tpu.dynamic_rotate %82 by %c239_i32_74 dim 1 : vector<8x256xf32>, i32 -> vector<8x256xf32>
    %150 = vector.extract_strided_slice %0 {offsets = [8, 0, 0], sizes = [1, 1, 256], strides = [1, 1, 1]} : vector<9x1x256xf32> to vector<1x1x256xf32>
    %151 = vector.shape_cast %150 : vector<1x1x256xf32> to vector<1x256xf32>
    %152 = vector.broadcast %151 : vector<1x256xf32> to vector<8x256xf32>
    %153 = arith.mulf %149, %152 : vector<8x256xf32>
    %c8_75 = arith.constant 8 : index
    %c0_76 = arith.constant 0 : index
    %c0_77 = arith.constant 0 : index
    %154 = vector.load %arg5[%c8_75, %c0_76, %c0_77] : memref<9x8x8xf32, #tpu.memory_space<vmem>>, vector<1x8x8xf32>
    %155 = vector.shape_cast %154 : vector<1x8x8xf32> to vector<8x8xf32>
    %cst_78 = arith.constant dense<0.000000e+00> : vector<8x256xf32>
    %156 = tpu.matmul %155, %153, %cst_78 {dimension_numbers = #tpu.dot_dimension_numbers<[1], [0], [0], [1], [0, 0, 1, 1], [], []>} : vector<8x8xf32>, vector<8x256xf32>, vector<8x256xf32> -> vector<8x256xf32>
    %157 = arith.addf %148, %156 : vector<8x256xf32>
    %c0_79 = arith.constant 0 : index
    %c0_80 = arith.constant 0 : index
    %158 = vector.load %arg6[%c0_79, %c0_80] : memref<8x1xf32, #tpu.memory_space<vmem>>, vector<8x1xf32>
    %159 = vector.broadcast %158 : vector<8x1xf32> to vector<8x256xf32>
    %160 = arith.addf %157, %159 : vector<8x256xf32>
    %161 = arith.addf %160, %2 : vector<8x256xf32>
    %cst_81 = arith.constant 0.000000e+00 : f32
    %162 = vector.broadcast %cst_81 : f32 to vector<8x256xf32>
    %163 = arith.maximumf %161, %162 : vector<8x256xf32>
    %c0_82 = arith.constant 0 : index
    %c0_83 = arith.constant 0 : index
    %c0_84 = arith.constant 0 : index
    %164 = vector.load %arg7[%c0_82, %c0_83, %c0_84] : memref<1x8x256xf32, #tpu.memory_space<vmem>>, vector<1x8x256xf32>
    %165 = vector.shape_cast %164 : vector<1x8x256xf32> to vector<8x256xf32>
    %166 = vector.shape_cast %163 : vector<8x256xf32> to vector<1x8x256xf32>
    tpu.vector_store %arg7[%c0_82, %c0_83, %c0_84], %166 {strides = array<i32>} : memref<1x8x256xf32, #tpu.memory_space<vmem>>, vector<1x8x256xf32>,
    return
  }
  func.func @transform_0(%arg0: i32) -> (i32, i32, i32) {
    %c0_i32 = arith.constant 0 : i32
    %c0_i32_0 = arith.constant 0 : i32
    %c0_i32_1 = arith.constant 0 : i32
    return %arg0, %c0_i32, %c0_i32_0 : i32, i32, i32
  }
  func.func @transform_1(%arg0: i32) -> (i32, i32, i32) {
    %c0_i32 = arith.constant 0 : i32
    %c0_i32_0 = arith.constant 0 : i32
    %c0_i32_1 = arith.constant 0 : i32
    %c0_i32_2 = arith.constant 0 : i32
    return %c0_i32, %c0_i32_0, %c0_i32_1 : i32, i32, i32
  }
  func.func @transform_2(%arg0: i32) -> (i32, i32, i32) {
    %c0_i32 = arith.constant 0 : i32
    %c0_i32_0 = arith.constant 0 : i32
    %c0_i32_1 = arith.constant 0 : i32
    %c0_i32_2 = arith.constant 0 : i32
    return %c0_i32, %c0_i32_0, %c0_i32_1 : i32, i32, i32
  }
  func.func @transform_3(%arg0: i32) -> (i32, i32) {
    %c0_i32 = arith.constant 0 : i32
    %c0_i32_0 = arith.constant 0 : i32
    %c0_i32_1 = arith.constant 0 : i32
    return %c0_i32, %c0_i32_0 : i32, i32
  }
  func.func @transform_4(%arg0: i32) -> (i32, i32, i32) {
    %c0_i32 = arith.constant 0 : i32
    %c0_i32_0 = arith.constant 0 : i32
    %c0_i32_1 = arith.constant 0 : i32
    %c0_i32_2 = arith.constant 0 : i32
    return %c0_i32, %c0_i32_0, %c0_i32_1 : i32, i32, i32
  }
  func.func @transform_5(%arg0: i32) -> (i32, i32) {
    %c0_i32 = arith.constant 0 : i32
    %c0_i32_0 = arith.constant 0 : i32
    %c0_i32_1 = arith.constant 0 : i32
    return %c0_i32, %c0_i32_0 : i32, i32
  }
  func.func @transform_6(%arg0: i32) -> (i32, i32, i32) {
    %c0_i32 = arith.constant 0 : i32
    %c0_i32_0 = arith.constant 0 : i32
    %c0_i32_1 = arith.constant 0 : i32
    return %arg0, %c0_i32, %c0_i32_0 : i32, i32, i32
  }
}

</mosaic_0001>

<llo_original>
// kernel: tpu_custom_call.1
$region0: #{tpu_custom_call.1}
  #allocation0 [shape = 'u32[]', space=smem, size = 0x4, offset = 0x4, fixed_abs, tag = 'smem constant byte address 0x4 - core index']
  #allocation1 [shape = 'u32[144,128]{1,0:T(1,128)}', space=vmem, size = 0x12000, scoped, tag = 'internal scratch']
  %s0 = inlined_call_operand.vmem [shape: f32[2,8,256], index: 0, kind: input, shape index: {}]
  %s1 = inlined_call_operand.vmem [shape: f32[9,1,256], index: 1, kind: input, shape index: {}]
  %s2 = inlined_call_operand.vmem [shape: f32[9,8,8], index: 2, kind: input, shape index: {}]
  %s3 = inlined_call_operand.vmem [shape: f32[8,1], index: 3, kind: input, shape index: {}]
  %s4 = inlined_call_operand.vmem [shape: f32[9,8,8], index: 4, kind: input, shape index: {}]
  %s5 = inlined_call_operand.vmem [shape: f32[8,1], index: 5, kind: input, shape index: {}]
  %s6 = inlined_call_operand.hbm [shape: f32[2,8,256], index: 6, kind: output, shape index: {}]
  %s7 = sld [smem:[#allocation0]]
  $region57: #{tpu_custom_call.1} parent=0
    _
  %s9 = ssub.s32 1, %s7
  %s10 = scalar_select 0, %s9, %s7
  $region1: #{tpu_custom_call.1} parent=0
    #allocation2 [shape = 'u8[16384]{0}', space=vmem, size = 0x4000, scoped, tag = 'output window, operand 0']
    #allocation3 [shape = 's32[2]{0}', space=sflag, size = 0x8, scoped, tag = 'scoped memory for tpu_custom_call.1']
    %11 = vsyncpa [#allocation3], 0
    %s12 = scalar_lea.sflag [#allocation3], 1
    %13 = vsyncpa %s12, 0
    loop: start=0, step=1, limit=4
    $region2: #{tpu_custom_call.1} parent=1 // loop_pre_header
      _
    $region3: #{tpu_custom_call.1} parent=1 // loop_header
      %s15 = sphi 0, %s19
      %p16 = scmp.ge.s32.totalorder %s15, 4
      %s25 = sphi 0, %s27
      %s28 = sphi 0, %s25
      %s29 = sphi 0, %s28
      %s45 = sphi 0, %s29
      %s49 = sphi 0, %s49
      %s51 = sphi 0, %s49
      %s52 = sphi 0, %s51
      %s66 = sphi 0, %s52
      %s70 = sphi 0, %s70
      %s72 = sphi 0, %s70
      %s73 = sphi 0, %s72
      %s87 = sphi 0, %s73
      %s91 = sphi 0, %s91
      %s93 = sphi 0, %s91
      %s94 = sphi 0, %s93
      %s108 = sphi 0, %s94
      %s112 = sphi 0, %s112
      %s114 = sphi 0, %s112
      %s115 = sphi 0, %s114
      %s129 = sphi 0, %s115
      %s133 = sphi 0, %s133
      %s135 = sphi 0, %s133
      %s136 = sphi 0, %s135
      %s150 = sphi 0, %s136
      %s156 = sphi 0, %s158
      %s159 = sphi 0, %s156
      %s160 = sphi 0, %s159
      %s176 = sphi 0, %s160
    $region4: #{tpu_custom_call.1} parent=1 // loop_header_branch
      %18 = sbr.rel (%p16) target = $region8
    $region5: #{tpu_custom_call.1} parent=1 // loop_body
      %s20 = ssub.s32 %s15, 1
      %s21 = ssub.s32 %s15, 2
      %s22 = sadd.s32 %s15, 1
      %s23 = ssub.s32 %s15, %s22
      %p24 = scmp.eq.s32.totalorder %s23, 0
      %s26 = sadd.s32 %s25, 1
      %s27 = scalar_select %p24, %s25, %s26
      %p30 = pneg %p24
      %p31 = scmp.eq.s32.totalorder %s15, 1
      %p32 = por %p30, %p31
      %p33 = scmp.ne.s32.totalorder %s25, %s28
      %p34 = scmp.eq.s32.totalorder %s15, 0
      %p35 = por %p33, %p34
      %p36 = scmp.ne.s32.totalorder %s25, %s28
      %p37 = scmp.eq.s32.totalorder %s20, 1
      %p38 = por %p36, %p37
      %p39 = scmp.ne.s32.totalorder %s28, %s29
      %p40 = scmp.eq.s32.totalorder %s20, 0
      %p41 = por %p39, %p40
      %p42 = scmp.ne.s32.totalorder %s28, %s29
      %p43 = scmp.eq.s32.totalorder %s21, 1
      %p44 = por %p42, %p43
      %p46 = scmp.ne.s32.totalorder %s29, %s45
      %p47 = scmp.eq.s32.totalorder %s21, 0
      %p48 = por %p46, %p47
      %s50 = sadd.s32 %s49, 1
      %p53 = scmp.eq.s32.totalorder %s15, 1
      %p54 = scmp.ne.s32.totalorder %s49, %s51
      %p55 = scmp.eq.s32.totalorder %s15, 0
      %p56 = por %p54, %p55
      %p57 = scmp.ne.s32.totalorder %s49, %s51
      %p58 = scmp.eq.s32.totalorder %s20, 1
      %p59 = por %p57, %p58
      %p60 = scmp.ne.s32.totalorder %s51, %s52
      %p61 = scmp.eq.s32.totalorder %s20, 0
      %p62 = por %p60, %p61
      %p63 = scmp.ne.s32.totalorder %s51, %s52
      %p64 = scmp.eq.s32.totalorder %s21, 1
      %p65 = por %p63, %p64
      %p67 = scmp.ne.s32.totalorder %s52, %s66
      %p68 = scmp.eq.s32.totalorder %s21, 0
      %p69 = por %p67, %p68
      %s71 = sadd.s32 %s70, 1
      %p74 = scmp.eq.s32.totalorder %s15, 1
      %p75 = scmp.ne.s32.totalorder %s70, %s72
      %p76 = scmp.eq.s32.totalorder %s15, 0
      %p77 = por %p75, %p76
      %p78 = scmp.ne.s32.totalorder %s70, %s72
      %p79 = scmp.eq.s32.totalorder %s20, 1
      %p80 = por %p78, %p79
      %p81 = scmp.ne.s32.totalorder %s72, %s73
      %p82 = scmp.eq.s32.totalorder %s20, 0
      %p83 = por %p81, %p82
      %p84 = scmp.ne.s32.totalorder %s72, %s73
      %p85 = scmp.eq.s32.totalorder %s21, 1
      %p86 = por %p84, %p85
      %p88 = scmp.ne.s32.totalorder %s73, %s87
      %p89 = scmp.eq.s32.totalorder %s21, 0
      %p90 = por %p88, %p89
      %s92 = sadd.s32 %s91, 1
      %p95 = scmp.eq.s32.totalorder %s15, 1
      %p96 = scmp.ne.s32.totalorder %s91, %s93
      %p97 = scmp.eq.s32.totalorder %s15, 0
      %p98 = por %p96, %p97
      %p99 = scmp.ne.s32.totalorder %s91, %s93
      %p100 = scmp.eq.s32.totalorder %s20, 1
      %p101 = por %p99, %p100
      %p102 = scmp.ne.s32.totalorder %s93, %s94
      %p103 = scmp.eq.s32.totalorder %s20, 0
      %p104 = por %p102, %p103
      %p105 = scmp.ne.s32.totalorder %s93, %s94
      %p106 = scmp.eq.s32.totalorder %s21, 1
      %p107 = por %p105, %p106
      %p109 = scmp.ne.s32.totalorder %s94, %s108
      %p110 = scmp.eq.s32.totalorder %s21, 0
      %p111 = por %p109, %p110
      %s113 = sadd.s32 %s112, 1
      %p116 = scmp.eq.s32.totalorder %s15, 1
      %p117 = scmp.ne.s32.totalorder %s112, %s114
      %p118 = scmp.eq.s32.totalorder %s15, 0
      %p119 = por %p117, %p118
      %p120 = scmp.ne.s32.totalorder %s112, %s114
      %p121 = scmp.eq.s32.totalorder %s20, 1
      %p122 = por %p120, %p121
      %p123 = scmp.ne.s32.totalorder %s114, %s115
      %p124 = scmp.eq.s32.totalorder %s20, 0
      %p125 = por %p123, %p124
      %p126 = scmp.ne.s32.totalorder %s114, %s115
      %p127 = scmp.eq.s32.totalorder %s21, 1
      %p128 = por %p126, %p127
      %p130 = scmp.ne.s32.totalorder %s115, %s129
      %p131 = scmp.eq.s32.totalorder %s21, 0
      %p132 = por %p130, %p131
      %s134 = sadd.s32 %s133, 1
      %p137 = scmp.eq.s32.totalorder %s15, 1
      %p138 = scmp.ne.s32.totalorder %s133, %s135
      %p139 = scmp.eq.s32.totalorder %s15, 0
      %p140 = por %p138, %p139
      %p141 = scmp.ne.s32.totalorder %s133, %s135
      %p142 = scmp.eq.s32.totalorder %s20, 1
      %p143 = por %p141, %p142
      %p144 = scmp.ne.s32.totalorder %s135, %s136
      %p145 = scmp.eq.s32.totalorder %s20, 0
      %p146 = por %p144, %p145
      %p147 = scmp.ne.s32.totalorder %s135, %s136
      %p148 = scmp.eq.s32.totalorder %s21, 1
      %p149 = por %p147, %p148
      %p151 = scmp.ne.s32.totalorder %s136, %s150
      %p152 = scmp.eq.s32.totalorder %s21, 0
      %p153 = por %p151, %p152
      %s154 = ssub.s32 %s15, %s22
      %p155 = scmp.eq.s32.totalorder %s154, 0
      %s157 = sadd.s32 %s156, 1
      %s158 = scalar_select %p155, %s156, %s157
      %p161 = pneg %p155
      %p162 = scmp.eq.s32.totalorder %s15, 1
      %p163 = por %p161, %p162
      %p164 = scmp.ne.s32.totalorder %s156, %s159
      %p165 = scmp.eq.s32.totalorder %s15, 0
      %p166 = por %p164, %p165
      %p167 = scmp.ne.s32.totalorder %s156, %s159
      %p168 = scmp.eq.s32.totalorder %s20, 1
      %p169 = por %p167, %p168
      %p170 = scmp.ne.s32.totalorder %s159, %s160
      %p171 = scmp.eq.s32.totalorder %s20, 0
      %p172 = por %p170, %p171
      %p173 = scmp.ne.s32.totalorder %s159, %s160
      %p174 = scmp.eq.s32.totalorder %s21, 1
      %p175 = por %p173, %p174
      %p177 = scmp.ne.s32.totalorder %s160, %s176
      %p178 = scmp.eq.s32.totalorder %s21, 0
      %p179 = por %p177, %p178
      %p180 = scmp.le.s32.totalorder 1, %s15
      %p181 = scmp.lt.s32.totalorder %s15, 3
      %p182 = pnand %p180, %p181
      %p183 = pneg %p182
      // Predicated region
      $region9: #{tpu_custom_call.1} parent=5 // pred_check
        _
      $region10: #{tpu_custom_call.1} parent=5 // pred_check_branch
        %185 = sbr.rel (%p182) target = $region12
      $region11: #{tpu_custom_call.1} parent=5 // pred_region
        %s186 = ssub.s32 %s15, 1
        // Predicated region
        $region13: #{tpu_custom_call.1} parent=11 // pred_check
          %p187 = pneg %p62
        $region14: #{tpu_custom_call.1} parent=11 // pred_check_branch
          %189 = sbr.rel (%p187) target = $region16
        $region15: #{tpu_custom_call.1} parent=11 // pred_region
          _
        $region16: #{tpu_custom_call.1} parent=11 // pred_fallthru
          _
        // Predicated region
        $region17: #{tpu_custom_call.1} parent=11 // pred_check
          %p190 = pneg %p83
        $region18: #{tpu_custom_call.1} parent=11 // pred_check_branch
          %192 = sbr.rel (%p190) target = $region20
        $region19: #{tpu_custom_call.1} parent=11 // pred_region
          _
        $region20: #{tpu_custom_call.1} parent=11 // pred_fallthru
          _
        // Predicated region
        $region21: #{tpu_custom_call.1} parent=11 // pred_check
          %p193 = pneg %p104
        $region22: #{tpu_custom_call.1} parent=11 // pred_check_branch
          %195 = sbr.rel (%p193) target = $region24
        $region23: #{tpu_custom_call.1} parent=11 // pred_region
          _
        $region24: #{tpu_custom_call.1} parent=11 // pred_fallthru
          _
        // Predicated region
        $region25: #{tpu_custom_call.1} parent=11 // pred_check
          %p196 = pneg %p125
        $region26: #{tpu_custom_call.1} parent=11 // pred_check_branch
          %198 = sbr.rel (%p196) target = $region28
        $region27: #{tpu_custom_call.1} parent=11 // pred_region
          _
        $region28: #{tpu_custom_call.1} parent=11 // pred_fallthru
          _
        // Predicated region
        $region29: #{tpu_custom_call.1} parent=11 // pred_check
          %p199 = pneg %p146
        $region30: #{tpu_custom_call.1} parent=11 // pred_check_branch
          %201 = sbr.rel (%p199) target = $region32
        $region31: #{tpu_custom_call.1} parent=11 // pred_region
          _
        $region32: #{tpu_custom_call.1} parent=11 // pred_fallthru
          _
      $region12: #{tpu_custom_call.1} parent=5 // pred_fallthru
        _
      %p202 = scmp.lt.s32.totalorder %s15, 2
      // Predicated region
      $region33: #{tpu_custom_call.1} parent=5 // pred_check
        %p203 = pneg %p202
      $region34: #{tpu_custom_call.1} parent=5 // pred_check_branch
        %205 = sbr.rel (%p203) target = $region36
      $region35: #{tpu_custom_call.1} parent=5 // pred_region
        // Predicated region
        $region37: #{tpu_custom_call.1} parent=35 // pred_check
          %p206 = pneg %p35
        $region38: #{tpu_custom_call.1} parent=35 // pred_check_branch
          %208 = sbr.rel (%p206) target = $region40
        $region39: #{tpu_custom_call.1} parent=35 // pred_region
          %p209 = scmp.lt.s32.totalorder %s15, 1
          %s210 = scalar_select %p209, %s15, 1
          %s211 = smul.addr %s210, 2
          %s212 = smul.addr %s211, 8
          %s213 = scalar_lea.vmem %s0, %s212
        $region40: #{tpu_custom_call.1} parent=35 // pred_fallthru
          _
      $region36: #{tpu_custom_call.1} parent=5 // pred_fallthru
        _
      %p214 = scmp.le.s32.totalorder 1, %s15
      %p215 = scmp.lt.s32.totalorder %s15, 3
      %p216 = pnand %p214, %p215
      %p217 = pneg %p216
      // Predicated region
      $region41: #{tpu_custom_call.1} parent=5 // pred_check
        _
      $region42: #{tpu_custom_call.1} parent=5 // pred_check_branch
        %219 = sbr.rel (%p216) target = $region44
      $region43: #{tpu_custom_call.1} parent=5 // pred_region
        %s220 = ssub.s32 %s15, 1
        %p221 = scmp.lt.s32.totalorder %s20, 1
        %s222 = scalar_select %p221, %s20, 1
        %s223 = smul.addr %s222, 2
        %s224 = smul.addr %s223, 8
        %s225 = scalar_lea.vmem %s0, %s224
        %p226 = pneg %p41
        %p227 = pneg %p38
        %p228 = pneg %p62
        %p229 = pneg %p59
        %p230 = pneg %p83
        %p231 = pneg %p80
        %p232 = pneg %p104
        %p233 = pneg %p101
        %p234 = pneg %p125
        %p235 = pneg %p122
        %p236 = pneg %p146
        %p237 = pneg %p143
        %p238 = pneg %p172
        %p239 = pneg %p169
        %s240 = sand.u32 %s159, 1
        %s241 = scalar_lea.sflag [#allocation3], %s240
        %s242 = sand.u32 %s159, 1
        %s243 = smul.addr %s242, 16
        %s244 = scalar_lea.vmem [#allocation2], %s243
        %p245 = scmp.lt.s32.totalorder %s20, 1
        %s246 = scalar_select %p245, %s20, 1
        %s247 = smul.addr %s246, 2
        %s248 = smul.addr %s247, 8
        %s249 = scalar_lea.vmem %s0, %s248
        %v250 = vld [vmem:[%s1] sm:$0x3]
        %v251 = vld [vmem:[%s1 + $0x2] sm:$0x3]
        %v252 = vld [vmem:[%s1 + $0x4] sm:$0x3]
        %v253 = vld [vmem:[%s1 + $0x6] sm:$0x3]
        %v254 = vld [vmem:[%s1 + $0xa] sm:$0x3]
        %v255 = vld [vmem:[%s1 + $0xc] sm:$0x3]
        %v256 = vld [vmem:[%s1 + $0xe] sm:$0x3]
        %v257 = vld [vmem:[%s1 + $0x10] sm:$0x3]
        %v258 = vld [vmem:[%s249] sm:$0xff]
        %v259 = vld [vmem:[%s249 + $0x8] sm:$0xff]
        %s260 = scalar_lea.vmem %s2, 32
        %v261 = vld [vmem:[%s260] sm:$0xff]
        %262 = vrot.lane.b32.xlu0 %v258, 17
        %v263 = vpop.permute.xlu0 %262
        %264 = vrot.lane.b32.xlu0 %v259, 17
        %v265 = vpop.permute.xlu0 %264
        %v266 = vlaneseq
        %v267 = vand.u32 %v266, 127
        %vm268 = vcmp.lt.s32.totalorder %v267, 17
        %v269 = vsel %vm268, %v263, %v265
        %v270 = vsel %vm268, %v265, %v263
        %v272 = vlaneseq
        %v273 = vshrl.u32 %v272, 7
        %v274 = vsub.s32 0, %v273
        %v275 = vrot.slane %v250, %v274
        %v276 = vlaneseq
        %v277 = vshrl.u32 %v276, 7
        %v278 = vsub.s32 1, %v277
        %v279 = vrot.slane %v250, %v278
        %v282 = vmul.f32 %v270, %v275
        %v283 = vmul.f32 %v269, %v279
        %v284 = vld [vmem:[%s2] sm:$0xff]
        %vm285 = vcmask 64512
        %v287 = vsel %vm285, %v284, 0
        %289 = vmatprep.subr.mxu0 %v283
        %290 = vmatpush1.msra.mxu0 %v282
        %291 = vmatprep.subr.mxu0 0.0
        %292 = vmatpush1.msra.mxu0 0.0
        %293 = vmatprep.subr.mxu0 0.0
        %294 = vmatpush1.msra.mxu0 0.0
        %295 = vmatprep.subr.mxu0 0.0
        %296 = vmatpush1.msra.mxu0 0.0
        %297 = vmatprep.subr.mxu0 0.0
        %298 = vmatpush1.msra.mxu0 0.0
        %299 = vmatprep.subr.mxu0 0.0
        %300 = vmatpush1.msra.mxu0 0.0
        %301 = vmatprep.subr.mxu0 0.0
        %302 = vmatpush1.msra.mxu0 0.0
        %303 = vmatprep.subr.mxu0 0.0
        %304 = vmatpush1.msra.mxu0 0.0
        %305 = vmatprep.subr.mxu0 0.0
        %306 = vmatpush1.msra.mxu0 0.0
        %307 = vmatprep.subr.mxu0 0.0
        %308 = vmatpush1.msra.mxu0 0.0
        %309 = vmatprep.subr.mxu0 0.0
        %310 = vmatpush1.msra.mxu0 0.0
        %311 = vmatprep.subr.mxu0 0.0
        %312 = vmatpush1.msra.mxu0 0.0
        %313 = vmatprep.subr.mxu0 0.0
        %314 = vmatpush1.msra.mxu0 0.0
        %315 = vmatprep.subr.mxu0 0.0
        %316 = vmatpush1.msra.mxu0 0.0
        %317 = vmatprep.subr.mxu0 0.0
        %318 = vmatpush1.msra.mxu0 0.0
        %319 = vmatprep.subr.mxu0 0.0
        %320 = vmatpush1.msra.mxu0 0.0
        %321 = vmatprep.subr.mxu0 0.0
        %322 = vmatpush1.msra.mxu0 0.0
        %323 = vmatprep.subr.mxu0 0.0
        %324 = vmatpush1.msra.mxu0 0.0
        %325 = vmatprep.subr.mxu0 0.0
        %326 = vmatpush1.msra.mxu0 0.0
        %327 = vmatprep.subr.mxu0 0.0
        %328 = vmatpush1.msra.mxu0 0.0
        %329 = vmatprep.subr.mxu0 0.0
        %330 = vmatpush1.msra.mxu0 0.0
        %331 = vmatprep.subr.mxu0 0.0
        %332 = vmatpush1.msra.mxu0 0.0
        %333 = vmatprep.subr.mxu0 0.0
        %334 = vmatpush1.msra.mxu0 0.0
        %335 = vmatprep.subr.mxu0 0.0
        %336 = vmatpush1.msra.mxu0 0.0
        %337 = vmatprep.subr.mxu0 0.0
        %338 = vmatpush1.msra.mxu0 0.0
        %339 = vmatprep.subr.mxu0 0.0
        %340 = vmatpush1.msra.mxu0 0.0
        %341 = vmatprep.subr.mxu0 0.0
        %342 = vmatpush1.msra.mxu0 0.0
        %343 = vmatprep.subr.mxu0 0.0
        %344 = vmatpush1.msra.mxu0 0.0
        %345 = vmatprep.subr.mxu0 0.0
        %346 = vmatpush1.msra.mxu0 0.0
        %347 = vmatprep.subr.mxu0 0.0
        %348 = vmatpush1.msra.mxu0 0.0
        %349 = vmatprep.subr.mxu0 0.0
        %350 = vmatpush1.msra.mxu0 0.0
        %351 = vmatprep.subr.mxu0 0.0
        %352 = vmatpush1.msra.mxu0 0.0
        %353 = vmatprep.mubr.f32.mxu0 0.0
        %354 = vmatmul.mubr.f32.gmra.mrb[0].mxu0 %v287
        %v355 = vpop.f32.mrb[0].mxu0
        %v356 = vadd.f32 0.0, %v355
        %v357 = vpop.f32.mrb[0].mxu0
        %v358 = vadd.f32 0.0, %v357
        %359 = vdwg.mxu0
        %v361 = vsel %vm285, %v261, 0
        %363 = vmatprep.subr.mxu0 %v259
        %364 = vmatpush1.msra.mxu0 %v258
        %365 = vmatprep.subr.mxu0 0.0
        %366 = vmatpush1.msra.mxu0 0.0
        %367 = vmatprep.subr.mxu0 0.0
        %368 = vmatpush1.msra.mxu0 0.0
        %369 = vmatprep.subr.mxu0 0.0
        %370 = vmatpush1.msra.mxu0 0.0
        %371 = vmatprep.subr.mxu0 0.0
        %372 = vmatpush1.msra.mxu0 0.0
        %373 = vmatprep.subr.mxu0 0.0
        %374 = vmatpush1.msra.mxu0 0.0
        %375 = vmatprep.subr.mxu0 0.0
        %376 = vmatpush1.msra.mxu0 0.0
        %377 = vmatprep.subr.mxu0 0.0
        %378 = vmatpush1.msra.mxu0 0.0
        %379 = vmatprep.subr.mxu0 0.0
        %380 = vmatpush1.msra.mxu0 0.0
        %381 = vmatprep.subr.mxu0 0.0
        %382 = vmatpush1.msra.mxu0 0.0
        %383 = vmatprep.subr.mxu0 0.0
        %384 = vmatpush1.msra.mxu0 0.0
        %385 = vmatprep.subr.mxu0 0.0
        %386 = vmatpush1.msra.mxu0 0.0
        %387 = vmatprep.subr.mxu0 0.0
        %388 = vmatpush1.msra.mxu0 0.0
        %389 = vmatprep.subr.mxu0 0.0
        %390 = vmatpush1.msra.mxu0 0.0
        %391 = vmatprep.subr.mxu0 0.0
        %392 = vmatpush1.msra.mxu0 0.0
        %393 = vmatprep.subr.mxu0 0.0
        %394 = vmatpush1.msra.mxu0 0.0
        %395 = vmatprep.subr.mxu0 0.0
        %396 = vmatpush1.msra.mxu0 0.0
        %397 = vmatprep.subr.mxu0 0.0
        %398 = vmatpush1.msra.mxu0 0.0
        %399 = vmatprep.subr.mxu0 0.0
        %400 = vmatpush1.msra.mxu0 0.0
        %401 = vmatprep.subr.mxu0 0.0
        %402 = vmatpush1.msra.mxu0 0.0
        %403 = vmatprep.subr.mxu0 0.0
        %404 = vmatpush1.msra.mxu0 0.0
        %405 = vmatprep.subr.mxu0 0.0
        %406 = vmatpush1.msra.mxu0 0.0
        %407 = vmatprep.subr.mxu0 0.0
        %408 = vmatpush1.msra.mxu0 0.0
        %409 = vmatprep.subr.mxu0 0.0
        %410 = vmatpush1.msra.mxu0 0.0
        %411 = vmatprep.subr.mxu0 0.0
        %412 = vmatpush1.msra.mxu0 0.0
        %413 = vmatprep.subr.mxu0 0.0
        %414 = vmatpush1.msra.mxu0 0.0
        %415 = vmatprep.subr.mxu0 0.0
        %416 = vmatpush1.msra.mxu0 0.0
        %417 = vmatprep.subr.mxu0 0.0
        %418 = vmatpush1.msra.mxu0 0.0
        %419 = vmatprep.subr.mxu0 0.0
        %420 = vmatpush1.msra.mxu0 0.0
        %421 = vmatprep.subr.mxu0 0.0
        %422 = vmatpush1.msra.mxu0 0.0
        %423 = vmatprep.subr.mxu0 0.0
        %424 = vmatpush1.msra.mxu0 0.0
        %425 = vmatprep.subr.mxu0 0.0
        %426 = vmatpush1.msra.mxu0 0.0
        %427 = vmatprep.mubr.f32.mxu0 0.0
        %428 = vmatmul.mubr.f32.gmra.mrb[0].mxu0 %v361
        %v429 = vpop.f32.mrb[0].mxu0
        %v430 = vadd.f32 %v356, %v429
        %v431 = vpop.f32.mrb[0].mxu0
        %v432 = vadd.f32 %v358, %v431
        %433 = vdwg.mxu0
        %434 = vrot.lane.b32.xlu0 %v258, 16
        %v435 = vpop.permute.xlu0 %434
        %436 = vrot.lane.b32.xlu0 %v259, 16
        %v437 = vpop.permute.xlu0 %436
        %vm438 = vcmp.lt.s32.totalorder %v267, 16
        %v439 = vsel %vm438, %v435, %v437
        %v440 = vsel %vm438, %v437, %v435
        %v442 = vlaneseq
        %v443 = vshrl.u32 %v442, 7
        %v444 = vsub.s32 0, %v443
        %v445 = vrot.slane %v251, %v444
        %v446 = vlaneseq
        %v447 = vshrl.u32 %v446, 7
        %v448 = vsub.s32 1, %v447
        %v449 = vrot.slane %v251, %v448
        %v452 = vmul.f32 %v440, %v445
        %v453 = vmul.f32 %v439, %v449
        %s454 = scalar_lea.vmem %s2, 8
        %v455 = vld [vmem:[%s454] sm:$0xff]
        %v457 = vsel %vm285, %v455, 0
        %459 = vmatprep.subr.mxu0 %v453
        %460 = vmatpush1.msra.mxu0 %v452
        %461 = vmatprep.subr.mxu0 0.0
        %462 = vmatpush1.msra.mxu0 0.0
        %463 = vmatprep.subr.mxu0 0.0
        %464 = vmatpush1.msra.mxu0 0.0
        %465 = vmatprep.subr.mxu0 0.0
        %466 = vmatpush1.msra.mxu0 0.0
        %467 = vmatprep.subr.mxu0 0.0
        %468 = vmatpush1.msra.mxu0 0.0
        %469 = vmatprep.subr.mxu0 0.0
        %470 = vmatpush1.msra.mxu0 0.0
        %471 = vmatprep.subr.mxu0 0.0
        %472 = vmatpush1.msra.mxu0 0.0
        %473 = vmatprep.subr.mxu0 0.0
        %474 = vmatpush1.msra.mxu0 0.0
        %475 = vmatprep.subr.mxu0 0.0
        %476 = vmatpush1.msra.mxu0 0.0
        %477 = vmatprep.subr.mxu0 0.0
        %478 = vmatpush1.msra.mxu0 0.0
        %479 = vmatprep.subr.mxu0 0.0
        %480 = vmatpush1.msra.mxu0 0.0
        %481 = vmatprep.subr.mxu0 0.0
        %482 = vmatpush1.msra.mxu0 0.0
        %483 = vmatprep.subr.mxu0 0.0
        %484 = vmatpush1.msra.mxu0 0.0
        %485 = vmatprep.subr.mxu0 0.0
        %486 = vmatpush1.msra.mxu0 0.0
        %487 = vmatprep.subr.mxu0 0.0
        %488 = vmatpush1.msra.mxu0 0.0
        %489 = vmatprep.subr.mxu0 0.0
        %490 = vmatpush1.msra.mxu0 0.0
        %491 = vmatprep.subr.mxu0 0.0
        %492 = vmatpush1.msra.mxu0 0.0
        %493 = vmatprep.subr.mxu0 0.0
        %494 = vmatpush1.msra.mxu0 0.0
        %495 = vmatprep.subr.mxu0 0.0
        %496 = vmatpush1.msra.mxu0 0.0
        %497 = vmatprep.subr.mxu0 0.0
        %498 = vmatpush1.msra.mxu0 0.0
        %499 = vmatprep.subr.mxu0 0.0
        %500 = vmatpush1.msra.mxu0 0.0
        %501 = vmatprep.subr.mxu0 0.0
        %502 = vmatpush1.msra.mxu0 0.0
        %503 = vmatprep.subr.mxu0 0.0
        %504 = vmatpush1.msra.mxu0 0.0
        %505 = vmatprep.subr.mxu0 0.0
        %506 = vmatpush1.msra.mxu0 0.0
        %507 = vmatprep.subr.mxu0 0.0
        %508 = vmatpush1.msra.mxu0 0.0
        %509 = vmatprep.subr.mxu0 0.0
        %510 = vmatpush1.msra.mxu0 0.0
        %511 = vmatprep.subr.mxu0 0.0
        %512 = vmatpush1.msra.mxu0 0.0
        %513 = vmatprep.subr.mxu0 0.0
        %514 = vmatpush1.msra.mxu0 0.0
        %515 = vmatprep.subr.mxu0 0.0
        %516 = vmatpush1.msra.mxu0 0.0
        %517 = vmatprep.subr.mxu0 0.0
        %518 = vmatpush1.msra.mxu0 0.0
        %519 = vmatprep.subr.mxu0 0.0
        %520 = vmatpush1.msra.mxu0 0.0
        %521 = vmatprep.subr.mxu0 0.0
        %522 = vmatpush1.msra.mxu0 0.0
        %523 = vmatprep.mubr.f32.mxu0 0.0
        %524 = vmatmul.mubr.f32.gmra.mrb[0].mxu0 %v457
        %v525 = vpop.f32.mrb[0].mxu0
        %v526 = vadd.f32 0.0, %v525
        %v527 = vpop.f32.mrb[0].mxu0
        %v528 = vadd.f32 0.0, %v527
        %529 = vdwg.mxu0
        %v530 = vadd.f32 %v430, %v526
        %v531 = vadd.f32 %v432, %v528
        %532 = vrot.lane.b32.xlu0 %v258, 15
        %v533 = vpop.permute.xlu0 %532
        %534 = vrot.lane.b32.xlu0 %v259, 15
        %v535 = vpop.permute.xlu0 %534
        %vm536 = vcmp.lt.s32.totalorder %v267, 15
        %v537 = vsel %vm536, %v533, %v535
        %v538 = vsel %vm536, %v535, %v533
        %v540 = vlaneseq
        %v541 = vshrl.u32 %v540, 7
        %v542 = vsub.s32 0, %v541
        %v543 = vrot.slane %v252, %v542
        %v544 = vlaneseq
        %v545 = vshrl.u32 %v544, 7
        %v546 = vsub.s32 1, %v545
        %v547 = vrot.slane %v252, %v546
        %v550 = vmul.f32 %v538, %v543
        %v551 = vmul.f32 %v537, %v547
        %s552 = scalar_lea.vmem %s2, 16
        %v553 = vld [vmem:[%s552] sm:$0xff]
        %v555 = vsel %vm285, %v553, 0
        %557 = vmatprep.subr.mxu0 %v551
        %558 = vmatpush1.msra.mxu0 %v550
        %559 = vmatprep.subr.mxu0 0.0
        %560 = vmatpush1.msra.mxu0 0.0
        %561 = vmatprep.subr.mxu0 0.0
        %562 = vmatpush1.msra.mxu0 0.0
        %563 = vmatprep.subr.mxu0 0.0
        %564 = vmatpush1.msra.mxu0 0.0
        %565 = vmatprep.subr.mxu0 0.0
        %566 = vmatpush1.msra.mxu0 0.0
        %567 = vmatprep.subr.mxu0 0.0
        %568 = vmatpush1.msra.mxu0 0.0
        %569 = vmatprep.subr.mxu0 0.0
        %570 = vmatpush1.msra.mxu0 0.0
        %571 = vmatprep.subr.mxu0 0.0
        %572 = vmatpush1.msra.mxu0 0.0
        %573 = vmatprep.subr.mxu0 0.0
        %574 = vmatpush1.msra.mxu0 0.0
        %575 = vmatprep.subr.mxu0 0.0
        %576 = vmatpush1.msra.mxu0 0.0
        %577 = vmatprep.subr.mxu0 0.0
        %578 = vmatpush1.msra.mxu0 0.0
        %579 = vmatprep.subr.mxu0 0.0
        %580 = vmatpush1.msra.mxu0 0.0
        %581 = vmatprep.subr.mxu0 0.0
        %582 = vmatpush1.msra.mxu0 0.0
        %583 = vmatprep.subr.mxu0 0.0
        %584 = vmatpush1.msra.mxu0 0.0
        %585 = vmatprep.subr.mxu0 0.0
        %586 = vmatpush1.msra.mxu0 0.0
        %587 = vmatprep.subr.mxu0 0.0
        %588 = vmatpush1.msra.mxu0 0.0
        %589 = vmatprep.subr.mxu0 0.0
        %590 = vmatpush1.msra.mxu0 0.0
        %591 = vmatprep.subr.mxu0 0.0
        %592 = vmatpush1.msra.mxu0 0.0
        %593 = vmatprep.subr.mxu0 0.0
        %594 = vmatpush1.msra.mxu0 0.0
        %595 = vmatprep.subr.mxu0 0.0
        %596 = vmatpush1.msra.mxu0 0.0
        %597 = vmatprep.subr.mxu0 0.0
        %598 = vmatpush1.msra.mxu0 0.0
        %599 = vmatprep.subr.mxu0 0.0
        %600 = vmatpush1.msra.mxu0 0.0
        %601 = vmatprep.subr.mxu0 0.0
        %602 = vmatpush1.msra.mxu0 0.0
        %603 = vmatprep.subr.mxu0 0.0
        %604 = vmatpush1.msra.mxu0 0.0
        %605 = vmatprep.subr.mxu0 0.0
        %606 = vmatpush1.msra.mxu0 0.0
        %607 = vmatprep.subr.mxu0 0.0
        %608 = vmatpush1.msra.mxu0 0.0
        %609 = vmatprep.subr.mxu0 0.0
        %610 = vmatpush1.msra.mxu0 0.0
        %611 = vmatprep.subr.mxu0 0.0
        %612 = vmatpush1.msra.mxu0 0.0
        %613 = vmatprep.subr.mxu0 0.0
        %614 = vmatpush1.msra.mxu0 0.0
        %615 = vmatprep.subr.mxu0 0.0
        %616 = vmatpush1.msra.mxu0 0.0
        %617 = vmatprep.subr.mxu0 0.0
        %618 = vmatpush1.msra.mxu0 0.0
        %619 = vmatprep.subr.mxu0 0.0
        %620 = vmatpush1.msra.mxu0 0.0
        %621 = vmatprep.mubr.f32.mxu0 0.0
        %622 = vmatmul.mubr.f32.gmra.mrb[0].mxu0 %v555
        %v623 = vpop.f32.mrb[0].mxu0
        %v624 = vadd.f32 0.0, %v623
        %v625 = vpop.f32.mrb[0].mxu0
        %v626 = vadd.f32 0.0, %v625
        %627 = vdwg.mxu0
        %v628 = vadd.f32 %v530, %v624
        %v629 = vadd.f32 %v531, %v626
        %630 = vrot.lane.b32.xlu0 %v258, 1
        %v631 = vpop.permute.xlu0 %630
        %632 = vrot.lane.b32.xlu0 %v259, 1
        %v633 = vpop.permute.xlu0 %632
        %vm634 = vcmp.lt.s32.totalorder %v267, 1
        %v635 = vsel %vm634, %v631, %v633
        %v636 = vsel %vm634, %v633, %v631
        %v638 = vlaneseq
        %v639 = vshrl.u32 %v638, 7
        %v640 = vsub.s32 0, %v639
        %v641 = vrot.slane %v253, %v640
        %v642 = vlaneseq
        %v643 = vshrl.u32 %v642, 7
        %v644 = vsub.s32 1, %v643
        %v645 = vrot.slane %v253, %v644
        %v648 = vmul.f32 %v636, %v641
        %v649 = vmul.f32 %v635, %v645
        %s650 = scalar_lea.vmem %s2, 24
        %v651 = vld [vmem:[%s650] sm:$0xff]
        %v653 = vsel %vm285, %v651, 0
        %655 = vmatprep.subr.mxu0 %v649
        %656 = vmatpush1.msra.mxu0 %v648
        %657 = vmatprep.subr.mxu0 0.0
        %658 = vmatpush1.msra.mxu0 0.0
        %659 = vmatprep.subr.mxu0 0.0
        %660 = vmatpush1.msra.mxu0 0.0
        %661 = vmatprep.subr.mxu0 0.0
        %662 = vmatpush1.msra.mxu0 0.0
        %663 = vmatprep.subr.mxu0 0.0
        %664 = vmatpush1.msra.mxu0 0.0
        %665 = vmatprep.subr.mxu0 0.0
        %666 = vmatpush1.msra.mxu0 0.0
        %667 = vmatprep.subr.mxu0 0.0
        %668 = vmatpush1.msra.mxu0 0.0
        %669 = vmatprep.subr.mxu0 0.0
        %670 = vmatpush1.msra.mxu0 0.0
        %671 = vmatprep.subr.mxu0 0.0
        %672 = vmatpush1.msra.mxu0 0.0
        %673 = vmatprep.subr.mxu0 0.0
        %674 = vmatpush1.msra.mxu0 0.0
        %675 = vmatprep.subr.mxu0 0.0
        %676 = vmatpush1.msra.mxu0 0.0
        %677 = vmatprep.subr.mxu0 0.0
        %678 = vmatpush1.msra.mxu0 0.0
        %679 = vmatprep.subr.mxu0 0.0
        %680 = vmatpush1.msra.mxu0 0.0
        %681 = vmatprep.subr.mxu0 0.0
        %682 = vmatpush1.msra.mxu0 0.0
        %683 = vmatprep.subr.mxu0 0.0
        %684 = vmatpush1.msra.mxu0 0.0
        %685 = vmatprep.subr.mxu0 0.0
        %686 = vmatpush1.msra.mxu0 0.0
        %687 = vmatprep.subr.mxu0 0.0
        %688 = vmatpush1.msra.mxu0 0.0
        %689 = vmatprep.subr.mxu0 0.0
        %690 = vmatpush1.msra.mxu0 0.0
        %691 = vmatprep.subr.mxu0 0.0
        %692 = vmatpush1.msra.mxu0 0.0
        %693 = vmatprep.subr.mxu0 0.0
        %694 = vmatpush1.msra.mxu0 0.0
        %695 = vmatprep.subr.mxu0 0.0
        %696 = vmatpush1.msra.mxu0 0.0
        %697 = vmatprep.subr.mxu0 0.0
        %698 = vmatpush1.msra.mxu0 0.0
        %699 = vmatprep.subr.mxu0 0.0
        %700 = vmatpush1.msra.mxu0 0.0
        %701 = vmatprep.subr.mxu0 0.0
        %702 = vmatpush1.msra.mxu0 0.0
        %703 = vmatprep.subr.mxu0 0.0
        %704 = vmatpush1.msra.mxu0 0.0
        %705 = vmatprep.subr.mxu0 0.0
        %706 = vmatpush1.msra.mxu0 0.0
        %707 = vmatprep.subr.mxu0 0.0
        %708 = vmatpush1.msra.mxu0 0.0
        %709 = vmatprep.subr.mxu0 0.0
        %710 = vmatpush1.msra.mxu0 0.0
        %711 = vmatprep.subr.mxu0 0.0
        %712 = vmatpush1.msra.mxu0 0.0
        %713 = vmatprep.subr.mxu0 0.0
        %714 = vmatpush1.msra.mxu0 0.0
        %715 = vmatprep.subr.mxu0 0.0
        %716 = vmatpush1.msra.mxu0 0.0
        %717 = vmatprep.subr.mxu0 0.0
        %718 = vmatpush1.msra.mxu0 0.0
        %719 = vmatprep.mubr.f32.mxu0 0.0
        %720 = vmatmul.mubr.f32.gmra.mrb[0].mxu0 %v653
        %v721 = vpop.f32.mrb[0].mxu0
        %v722 = vadd.f32 0.0, %v721
        %v723 = vpop.f32.mrb[0].mxu0
        %v724 = vadd.f32 0.0, %v723
        %725 = vdwg.mxu0
        %v726 = vadd.f32 %v628, %v722
        %v727 = vadd.f32 %v629, %v724
        %728 = vrot.lane.b32.xlu0 %v258, 127
        %v729 = vpop.permute.xlu0 %728
        %730 = vrot.lane.b32.xlu0 %v259, 127
        %v731 = vpop.permute.xlu0 %730
        %vm732 = vcmp.lt.s32.totalorder %v267, 127
        %v733 = vsel %vm732, %v729, %v731
        %v734 = vsel %vm732, %v731, %v729
        %v736 = vlaneseq
        %v737 = vshrl.u32 %v736, 7
        %v738 = vsub.s32 0, %v737
        %v739 = vrot.slane %v254, %v738
        %v740 = vlaneseq
        %v741 = vshrl.u32 %v740, 7
        %v742 = vsub.s32 1, %v741
        %v743 = vrot.slane %v254, %v742
        %v746 = vmul.f32 %v733, %v739
        %v747 = vmul.f32 %v734, %v743
        %s748 = scalar_lea.vmem %s2, 40
        %v749 = vld [vmem:[%s748] sm:$0xff]
        %v751 = vsel %vm285, %v749, 0
        %753 = vmatprep.subr.mxu0 %v747
        %754 = vmatpush1.msra.mxu0 %v746
        %755 = vmatprep.subr.mxu0 0.0
        %756 = vmatpush1.msra.mxu0 0.0
        %757 = vmatprep.subr.mxu0 0.0
        %758 = vmatpush1.msra.mxu0 0.0
        %759 = vmatprep.subr.mxu0 0.0
        %760 = vmatpush1.msra.mxu0 0.0
        %761 = vmatprep.subr.mxu0 0.0
        %762 = vmatpush1.msra.mxu0 0.0
        %763 = vmatprep.subr.mxu0 0.0
        %764 = vmatpush1.msra.mxu0 0.0
        %765 = vmatprep.subr.mxu0 0.0
        %766 = vmatpush1.msra.mxu0 0.0
        %767 = vmatprep.subr.mxu0 0.0
        %768 = vmatpush1.msra.mxu0 0.0
        %769 = vmatprep.subr.mxu0 0.0
        %770 = vmatpush1.msra.mxu0 0.0
        %771 = vmatprep.subr.mxu0 0.0
        %772 = vmatpush1.msra.mxu0 0.0
        %773 = vmatprep.subr.mxu0 0.0
        %774 = vmatpush1.msra.mxu0 0.0
        %775 = vmatprep.subr.mxu0 0.0
        %776 = vmatpush1.msra.mxu0 0.0
        %777 = vmatprep.subr.mxu0 0.0
        %778 = vmatpush1.msra.mxu0 0.0
        %779 = vmatprep.subr.mxu0 0.0
        %780 = vmatpush1.msra.mxu0 0.0
        %781 = vmatprep.subr.mxu0 0.0
        %782 = vmatpush1.msra.mxu0 0.0
        %783 = vmatprep.subr.mxu0 0.0
        %784 = vmatpush1.msra.mxu0 0.0
        %785 = vmatprep.subr.mxu0 0.0
        %786 = vmatpush1.msra.mxu0 0.0
        %787 = vmatprep.subr.mxu0 0.0
        %788 = vmatpush1.msra.mxu0 0.0
        %789 = vmatprep.subr.mxu0 0.0
        %790 = vmatpush1.msra.mxu0 0.0
        %791 = vmatprep.subr.mxu0 0.0
        %792 = vmatpush1.msra.mxu0 0.0
        %793 = vmatprep.subr.mxu0 0.0
        %794 = vmatpush1.msra.mxu0 0.0
        %795 = vmatprep.subr.mxu0 0.0
        %796 = vmatpush1.msra.mxu0 0.0
        %797 = vmatprep.subr.mxu0 0.0
        %798 = vmatpush1.msra.mxu0 0.0
        %799 = vmatprep.subr.mxu0 0.0
        %800 = vmatpush1.msra.mxu0 0.0
        %801 = vmatprep.subr.mxu0 0.0
        %802 = vmatpush1.msra.mxu0 0.0
        %803 = vmatprep.subr.mxu0 0.0
        %804 = vmatpush1.msra.mxu0 0.0
        %805 = vmatprep.subr.mxu0 0.0
        %806 = vmatpush1.msra.mxu0 0.0
        %807 = vmatprep.subr.mxu0 0.0
        %808 = vmatpush1.msra.mxu0 0.0
        %809 = vmatprep.subr.mxu0 0.0
        %810 = vmatpush1.msra.mxu0 0.0
        %811 = vmatprep.subr.mxu0 0.0
        %812 = vmatpush1.msra.mxu0 0.0
        %813 = vmatprep.subr.mxu0 0.0
        %814 = vmatpush1.msra.mxu0 0.0
        %815 = vmatprep.subr.mxu0 0.0
        %816 = vmatpush1.msra.mxu0 0.0
        %817 = vmatprep.mubr.f32.mxu0 0.0
        %818 = vmatmul.mubr.f32.gmra.mrb[0].mxu0 %v751
        %v819 = vpop.f32.mrb[0].mxu0
        %v820 = vadd.f32 0.0, %v819
        %v821 = vpop.f32.mrb[0].mxu0
        %v822 = vadd.f32 0.0, %v821
        %823 = vdwg.mxu0
        %v824 = vadd.f32 %v726, %v820
        %v825 = vadd.f32 %v727, %v822
        %826 = vrot.lane.b32.xlu0 %v258, 113
        %v827 = vpop.permute.xlu0 %826
        %828 = vrot.lane.b32.xlu0 %v259, 113
        %v829 = vpop.permute.xlu0 %828
        %vm830 = vcmp.lt.s32.totalorder %v267, 113
        %v831 = vsel %vm830, %v827, %v829
        %v832 = vsel %vm830, %v829, %v827
        %v834 = vlaneseq
        %v835 = vshrl.u32 %v834, 7
        %v836 = vsub.s32 0, %v835
        %v837 = vrot.slane %v255, %v836
        %v838 = vlaneseq
        %v839 = vshrl.u32 %v838, 7
        %v840 = vsub.s32 1, %v839
        %v841 = vrot.slane %v255, %v840
        %v844 = vmul.f32 %v831, %v837
        %v845 = vmul.f32 %v832, %v841
        %s846 = scalar_lea.vmem %s2, 48
        %v847 = vld [vmem:[%s846] sm:$0xff]
        %v849 = vsel %vm285, %v847, 0
        %851 = vmatprep.subr.mxu0 %v845
        %852 = vmatpush1.msra.mxu0 %v844
        %853 = vmatprep.subr.mxu0 0.0
        %854 = vmatpush1.msra.mxu0 0.0
        %855 = vmatprep.subr.mxu0 0.0
        %856 = vmatpush1.msra.mxu0 0.0
        %857 = vmatprep.subr.mxu0 0.0
        %858 = vmatpush1.msra.mxu0 0.0
        %859 = vmatprep.subr.mxu0 0.0
        %860 = vmatpush1.msra.mxu0 0.0
        %861 = vmatprep.subr.mxu0 0.0
        %862 = vmatpush1.msra.mxu0 0.0
        %863 = vmatprep.subr.mxu0 0.0
        %864 = vmatpush1.msra.mxu0 0.0
        %865 = vmatprep.subr.mxu0 0.0
        %866 = vmatpush1.msra.mxu0 0.0
        %867 = vmatprep.subr.mxu0 0.0
        %868 = vmatpush1.msra.mxu0 0.0
        %869 = vmatprep.subr.mxu0 0.0
        %870 = vmatpush1.msra.mxu0 0.0
        %871 = vmatprep.subr.mxu0 0.0
        %872 = vmatpush1.msra.mxu0 0.0
        %873 = vmatprep.subr.mxu0 0.0
        %874 = vmatpush1.msra.mxu0 0.0
        %875 = vmatprep.subr.mxu0 0.0
        %876 = vmatpush1.msra.mxu0 0.0
        %877 = vmatprep.subr.mxu0 0.0
        %878 = vmatpush1.msra.mxu0 0.0
        %879 = vmatprep.subr.mxu0 0.0
        %880 = vmatpush1.msra.mxu0 0.0
        %881 = vmatprep.subr.mxu0 0.0
        %882 = vmatpush1.msra.mxu0 0.0
        %883 = vmatprep.subr.mxu0 0.0
        %884 = vmatpush1.msra.mxu0 0.0
        %885 = vmatprep.subr.mxu0 0.0
        %886 = vmatpush1.msra.mxu0 0.0
        %887 = vmatprep.subr.mxu0 0.0
        %888 = vmatpush1.msra.mxu0 0.0
        %889 = vmatprep.subr.mxu0 0.0
        %890 = vmatpush1.msra.mxu0 0.0
        %891 = vmatprep.subr.mxu0 0.0
        %892 = vmatpush1.msra.mxu0 0.0
        %893 = vmatprep.subr.mxu0 0.0
        %894 = vmatpush1.msra.mxu0 0.0
        %895 = vmatprep.subr.mxu0 0.0
        %896 = vmatpush1.msra.mxu0 0.0
        %897 = vmatprep.subr.mxu0 0.0
        %898 = vmatpush1.msra.mxu0 0.0
        %899 = vmatprep.subr.mxu0 0.0
        %900 = vmatpush1.msra.mxu0 0.0
        %901 = vmatprep.subr.mxu0 0.0
        %902 = vmatpush1.msra.mxu0 0.0
        %903 = vmatprep.subr.mxu0 0.0
        %904 = vmatpush1.msra.mxu0 0.0
        %905 = vmatprep.subr.mxu0 0.0
        %906 = vmatpush1.msra.mxu0 0.0
        %907 = vmatprep.subr.mxu0 0.0
        %908 = vmatpush1.msra.mxu0 0.0
        %909 = vmatprep.subr.mxu0 0.0
        %910 = vmatpush1.msra.mxu0 0.0
        %911 = vmatprep.subr.mxu0 0.0
        %912 = vmatpush1.msra.mxu0 0.0
        %913 = vmatprep.subr.mxu0 0.0
        %914 = vmatpush1.msra.mxu0 0.0
        %915 = vmatprep.mubr.f32.mxu0 0.0
        %916 = vmatmul.mubr.f32.gmra.mrb[0].mxu0 %v849
        %v917 = vpop.f32.mrb[0].mxu0
        %v918 = vadd.f32 0.0, %v917
        %v919 = vpop.f32.mrb[0].mxu0
        %v920 = vadd.f32 0.0, %v919
        %921 = vdwg.mxu0
        %v922 = vadd.f32 %v824, %v918
        %v923 = vadd.f32 %v825, %v920
        %924 = vrot.lane.b32.xlu0 %v258, 112
        %v925 = vpop.permute.xlu0 %924
        %926 = vrot.lane.b32.xlu0 %v259, 112
        %v927 = vpop.permute.xlu0 %926
        %vm928 = vcmp.lt.s32.totalorder %v267, 112
        %v929 = vsel %vm928, %v925, %v927
        %v930 = vsel %vm928, %v927, %v925
        %v932 = vlaneseq
        %v933 = vshrl.u32 %v932, 7
        %v934 = vsub.s32 0, %v933
        %v935 = vrot.slane %v256, %v934
        %v936 = vlaneseq
        %v937 = vshrl.u32 %v936, 7
        %v938 = vsub.s32 1, %v937
        %v939 = vrot.slane %v256, %v938
        %v942 = vmul.f32 %v929, %v935
        %v943 = vmul.f32 %v930, %v939
        %s944 = scalar_lea.vmem %s2, 56
        %v945 = vld [vmem:[%s944] sm:$0xff]
        %v947 = vsel %vm285, %v945, 0
        %949 = vmatprep.subr.mxu0 %v943
        %950 = vmatpush1.msra.mxu0 %v942
        %951 = vmatprep.subr.mxu0 0.0
        %952 = vmatpush1.msra.mxu0 0.0
        %953 = vmatprep.subr.mxu0 0.0
        %954 = vmatpush1.msra.mxu0 0.0
        %955 = vmatprep.subr.mxu0 0.0
        %956 = vmatpush1.msra.mxu0 0.0
        %957 = vmatprep.subr.mxu0 0.0
        %958 = vmatpush1.msra.mxu0 0.0
        %959 = vmatprep.subr.mxu0 0.0
        %960 = vmatpush1.msra.mxu0 0.0
        %961 = vmatprep.subr.mxu0 0.0
        %962 = vmatpush1.msra.mxu0 0.0
        %963 = vmatprep.subr.mxu0 0.0
        %964 = vmatpush1.msra.mxu0 0.0
        %965 = vmatprep.subr.mxu0 0.0
        %966 = vmatpush1.msra.mxu0 0.0
        %967 = vmatprep.subr.mxu0 0.0
        %968 = vmatpush1.msra.mxu0 0.0
        %969 = vmatprep.subr.mxu0 0.0
        %970 = vmatpush1.msra.mxu0 0.0
        %971 = vmatprep.subr.mxu0 0.0
        %972 = vmatpush1.msra.mxu0 0.0
        %973 = vmatprep.subr.mxu0 0.0
        %974 = vmatpush1.msra.mxu0 0.0
        %975 = vmatprep.subr.mxu0 0.0
        %976 = vmatpush1.msra.mxu0 0.0
        %977 = vmatprep.subr.mxu0 0.0
        %978 = vmatpush1.msra.mxu0 0.0
        %979 = vmatprep.subr.mxu0 0.0
        %980 = vmatpush1.msra.mxu0 0.0
        %981 = vmatprep.subr.mxu0 0.0
        %982 = vmatpush1.msra.mxu0 0.0
        %983 = vmatprep.subr.mxu0 0.0
        %984 = vmatpush1.msra.mxu0 0.0
        %985 = vmatprep.subr.mxu0 0.0
        %986 = vmatpush1.msra.mxu0 0.0
        %987 = vmatprep.subr.mxu0 0.0
        %988 = vmatpush1.msra.mxu0 0.0
        %989 = vmatprep.subr.mxu0 0.0
        %990 = vmatpush1.msra.mxu0 0.0
        %991 = vmatprep.subr.mxu0 0.0
        %992 = vmatpush1.msra.mxu0 0.0
        %993 = vmatprep.subr.mxu0 0.0
        %994 = vmatpush1.msra.mxu0 0.0
        %995 = vmatprep.subr.mxu0 0.0
        %996 = vmatpush1.msra.mxu0 0.0
        %997 = vmatprep.subr.mxu0 0.0
        %998 = vmatpush1.msra.mxu0 0.0
        %999 = vmatprep.subr.mxu0 0.0
        %1000 = vmatpush1.msra.mxu0 0.0
        %1001 = vmatprep.subr.mxu0 0.0
        %1002 = vmatpush1.msra.mxu0 0.0
        %1003 = vmatprep.subr.mxu0 0.0
        %1004 = vmatpush1.msra.mxu0 0.0
        %1005 = vmatprep.subr.mxu0 0.0
        %1006 = vmatpush1.msra.mxu0 0.0
        %1007 = vmatprep.subr.mxu0 0.0
        %1008 = vmatpush1.msra.mxu0 0.0
        %1009 = vmatprep.subr.mxu0 0.0
        %1010 = vmatpush1.msra.mxu0 0.0
        %1011 = vmatprep.subr.mxu0 0.0
        %1012 = vmatpush1.msra.mxu0 0.0
        %1013 = vmatprep.mubr.f32.mxu0 0.0
        %1014 = vmatmul.mubr.f32.gmra.mrb[0].mxu0 %v947
        %v1015 = vpop.f32.mrb[0].mxu0
        %v1016 = vadd.f32 0.0, %v1015
        %v1017 = vpop.f32.mrb[0].mxu0
        %v1018 = vadd.f32 0.0, %v1017
        %1019 = vdwg.mxu0
        %v1020 = vadd.f32 %v922, %v1016
        %v1021 = vadd.f32 %v923, %v1018
        %1022 = vrot.lane.b32.xlu0 %v258, 111
        %v1023 = vpop.permute.xlu0 %1022
        %1024 = vrot.lane.b32.xlu0 %v259, 111
        %v1025 = vpop.permute.xlu0 %1024
        %vm1026 = vcmp.lt.s32.totalorder %v267, 111
        %v1027 = vsel %vm1026, %v1023, %v1025
        %v1028 = vsel %vm1026, %v1025, %v1023
        %v1030 = vlaneseq
        %v1031 = vshrl.u32 %v1030, 7
        %v1032 = vsub.s32 0, %v1031
        %v1033 = vrot.slane %v257, %v1032
        %v1034 = vlaneseq
        %v1035 = vshrl.u32 %v1034, 7
        %v1036 = vsub.s32 1, %v1035
        %v1037 = vrot.slane %v257, %v1036
        %v1040 = vmul.f32 %v1027, %v1033
        %v1041 = vmul.f32 %v1028, %v1037
        %s1042 = scalar_lea.vmem %s2, 64
        %v1043 = vld [vmem:[%s1042] sm:$0xff]
        %v1045 = vsel %vm285, %v1043, 0
        %1047 = vmatprep.subr.mxu0 %v1041
        %1048 = vmatpush1.msra.mxu0 %v1040
        %1049 = vmatprep.subr.mxu0 0.0
        %1050 = vmatpush1.msra.mxu0 0.0
        %1051 = vmatprep.subr.mxu0 0.0
        %1052 = vmatpush1.msra.mxu0 0.0
        %1053 = vmatprep.subr.mxu0 0.0
        %1054 = vmatpush1.msra.mxu0 0.0
        %1055 = vmatprep.subr.mxu0 0.0
        %1056 = vmatpush1.msra.mxu0 0.0
        %1057 = vmatprep.subr.mxu0 0.0
        %1058 = vmatpush1.msra.mxu0 0.0
        %1059 = vmatprep.subr.mxu0 0.0
        %1060 = vmatpush1.msra.mxu0 0.0
        %1061 = vmatprep.subr.mxu0 0.0
        %1062 = vmatpush1.msra.mxu0 0.0
        %1063 = vmatprep.subr.mxu0 0.0
        %1064 = vmatpush1.msra.mxu0 0.0
        %1065 = vmatprep.subr.mxu0 0.0
        %1066 = vmatpush1.msra.mxu0 0.0
        %1067 = vmatprep.subr.mxu0 0.0
        %1068 = vmatpush1.msra.mxu0 0.0
        %1069 = vmatprep.subr.mxu0 0.0
        %1070 = vmatpush1.msra.mxu0 0.0
        %1071 = vmatprep.subr.mxu0 0.0
        %1072 = vmatpush1.msra.mxu0 0.0
        %1073 = vmatprep.subr.mxu0 0.0
        %1074 = vmatpush1.msra.mxu0 0.0
        %1075 = vmatprep.subr.mxu0 0.0
        %1076 = vmatpush1.msra.mxu0 0.0
        %1077 = vmatprep.subr.mxu0 0.0
        %1078 = vmatpush1.msra.mxu0 0.0
        %1079 = vmatprep.subr.mxu0 0.0
        %1080 = vmatpush1.msra.mxu0 0.0
        %1081 = vmatprep.subr.mxu0 0.0
        %1082 = vmatpush1.msra.mxu0 0.0
        %1083 = vmatprep.subr.mxu0 0.0
        %1084 = vmatpush1.msra.mxu0 0.0
        %1085 = vmatprep.subr.mxu0 0.0
        %1086 = vmatpush1.msra.mxu0 0.0
        %1087 = vmatprep.subr.mxu0 0.0
        %1088 = vmatpush1.msra.mxu0 0.0
        %1089 = vmatprep.subr.mxu0 0.0
        %1090 = vmatpush1.msra.mxu0 0.0
        %1091 = vmatprep.subr.mxu0 0.0
        %1092 = vmatpush1.msra.mxu0 0.0
        %1093 = vmatprep.subr.mxu0 0.0
        %1094 = vmatpush1.msra.mxu0 0.0
        %1095 = vmatprep.subr.mxu0 0.0
        %1096 = vmatpush1.msra.mxu0 0.0
        %1097 = vmatprep.subr.mxu0 0.0
        %1098 = vmatpush1.msra.mxu0 0.0
        %1099 = vmatprep.subr.mxu0 0.0
        %1100 = vmatpush1.msra.mxu0 0.0
        %1101 = vmatprep.subr.mxu0 0.0
        %1102 = vmatpush1.msra.mxu0 0.0
        %1103 = vmatprep.subr.mxu0 0.0
        %1104 = vmatpush1.msra.mxu0 0.0
        %1105 = vmatprep.subr.mxu0 0.0
        %1106 = vmatpush1.msra.mxu0 0.0
        %1107 = vmatprep.subr.mxu0 0.0
        %1108 = vmatpush1.msra.mxu0 0.0
        %1109 = vmatprep.subr.mxu0 0.0
        %1110 = vmatpush1.msra.mxu0 0.0
        %1111 = vmatprep.mubr.f32.mxu0 0.0
        %1112 = vmatmul.mubr.f32.gmra.mrb[0].mxu0 %v1045
        %v1113 = vpop.f32.mrb[0].mxu0
        %v1114 = vadd.f32 0.0, %v1113
        %v1115 = vpop.f32.mrb[0].mxu0
        %v1116 = vadd.f32 0.0, %v1115
        %1117 = vdwg.mxu0
        %v1118 = vadd.f32 %v1020, %v1114
        %v1119 = vadd.f32 %v1021, %v1116
        %v1120 = vld [vmem:[%s3] sm:$0xff]
        %1122 = vset.pattern.permute.xlu0 0
        %1123 = vperm.xlu0 %1122, %v1120
        %v1124 = vpop.permute.xlu0 %1123
        %v1126 = vadd.f32 %v1118, %v1124
        %v1127 = vadd.f32 %v1119, %v1124
        %v1128 = vmax.f32 %v1126, 0.0
        %v1129 = vmax.f32 %v1127, 0.0
        %s1130 = scalar_lea.vmem %s4, 32
        %v1131 = vld [vmem:[%s1130] sm:$0xff]
        %1132 = vrot.lane.b32.xlu0 %v1128, 17
        %v1133 = vpop.permute.xlu0 %1132
        %1134 = vrot.lane.b32.xlu0 %v1129, 17
        %v1135 = vpop.permute.xlu0 %1134
        %v1136 = vsel %vm268, %v1133, %v1135
        %v1137 = vsel %vm268, %v1135, %v1133
        %v1138 = vmul.f32 %v1137, %v275
        %v1139 = vmul.f32 %v1136, %v279
        %v1140 = vld [vmem:[%s4] sm:$0xff]
        %v1142 = vsel %vm285, %v1140, 0
        %1144 = vmatprep.subr.mxu0 %v1139
        %1145 = vmatpush1.msra.mxu0 %v1138
        %1146 = vmatprep.subr.mxu0 0.0
        %1147 = vmatpush1.msra.mxu0 0.0
        %1148 = vmatprep.subr.mxu0 0.0
        %1149 = vmatpush1.msra.mxu0 0.0
        %1150 = vmatprep.subr.mxu0 0.0
        %1151 = vmatpush1.msra.mxu0 0.0
        %1152 = vmatprep.subr.mxu0 0.0
        %1153 = vmatpush1.msra.mxu0 0.0
        %1154 = vmatprep.subr.mxu0 0.0
        %1155 = vmatpush1.msra.mxu0 0.0
        %1156 = vmatprep.subr.mxu0 0.0
        %1157 = vmatpush1.msra.mxu0 0.0
        %1158 = vmatprep.subr.mxu0 0.0
        %1159 = vmatpush1.msra.mxu0 0.0
        %1160 = vmatprep.subr.mxu0 0.0
        %1161 = vmatpush1.msra.mxu0 0.0
        %1162 = vmatprep.subr.mxu0 0.0
        %1163 = vmatpush1.msra.mxu0 0.0
        %1164 = vmatprep.subr.mxu0 0.0
        %1165 = vmatpush1.msra.mxu0 0.0
        %1166 = vmatprep.subr.mxu0 0.0
        %1167 = vmatpush1.msra.mxu0 0.0
        %1168 = vmatprep.subr.mxu0 0.0
        %1169 = vmatpush1.msra.mxu0 0.0
        %1170 = vmatprep.subr.mxu0 0.0
        %1171 = vmatpush1.msra.mxu0 0.0
        %1172 = vmatprep.subr.mxu0 0.0
        %1173 = vmatpush1.msra.mxu0 0.0
        %1174 = vmatprep.subr.mxu0 0.0
        %1175 = vmatpush1.msra.mxu0 0.0
        %1176 = vmatprep.subr.mxu0 0.0
        %1177 = vmatpush1.msra.mxu0 0.0
        %1178 = vmatprep.subr.mxu0 0.0
        %1179 = vmatpush1.msra.mxu0 0.0
        %1180 = vmatprep.subr.mxu0 0.0
        %1181 = vmatpush1.msra.mxu0 0.0
        %1182 = vmatprep.subr.mxu0 0.0
        %1183 = vmatpush1.msra.mxu0 0.0
        %1184 = vmatprep.subr.mxu0 0.0
        %1185 = vmatpush1.msra.mxu0 0.0
        %1186 = vmatprep.subr.mxu0 0.0
        %1187 = vmatpush1.msra.mxu0 0.0
        %1188 = vmatprep.subr.mxu0 0.0
        %1189 = vmatpush1.msra.mxu0 0.0
        %1190 = vmatprep.subr.mxu0 0.0
        %1191 = vmatpush1.msra.mxu0 0.0
        %1192 = vmatprep.subr.mxu0 0.0
        %1193 = vmatpush1.msra.mxu0 0.0
        %1194 = vmatprep.subr.mxu0 0.0
        %1195 = vmatpush1.msra.mxu0 0.0
        %1196 = vmatprep.subr.mxu0 0.0
        %1197 = vmatpush1.msra.mxu0 0.0
        %1198 = vmatprep.subr.mxu0 0.0
        %1199 = vmatpush1.msra.mxu0 0.0
        %1200 = vmatprep.subr.mxu0 0.0
        %1201 = vmatpush1.msra.mxu0 0.0
        %1202 = vmatprep.subr.mxu0 0.0
        %1203 = vmatpush1.msra.mxu0 0.0
        %1204 = vmatprep.subr.mxu0 0.0
        %1205 = vmatpush1.msra.mxu0 0.0
        %1206 = vmatprep.subr.mxu0 0.0
        %1207 = vmatpush1.msra.mxu0 0.0
        %1208 = vmatprep.mubr.f32.mxu0 0.0
        %1209 = vmatmul.mubr.f32.gmra.mrb[0].mxu0 %v1142
        %v1210 = vpop.f32.mrb[0].mxu0
        %v1211 = vadd.f32 0.0, %v1210
        %v1212 = vpop.f32.mrb[0].mxu0
        %v1213 = vadd.f32 0.0, %v1212
        %1214 = vdwg.mxu0
        %v1216 = vsel %vm285, %v1131, 0
        %1218 = vmatprep.subr.mxu0 %v1129
        %1219 = vmatpush1.msra.mxu0 %v1128
        %1220 = vmatprep.subr.mxu0 0.0
        %1221 = vmatpush1.msra.mxu0 0.0
        %1222 = vmatprep.subr.mxu0 0.0
        %1223 = vmatpush1.msra.mxu0 0.0
        %1224 = vmatprep.subr.mxu0 0.0
        %1225 = vmatpush1.msra.mxu0 0.0
        %1226 = vmatprep.subr.mxu0 0.0
        %1227 = vmatpush1.msra.mxu0 0.0
        %1228 = vmatprep.subr.mxu0 0.0
        %1229 = vmatpush1.msra.mxu0 0.0
        %1230 = vmatprep.subr.mxu0 0.0
        %1231 = vmatpush1.msra.mxu0 0.0
        %1232 = vmatprep.subr.mxu0 0.0
        %1233 = vmatpush1.msra.mxu0 0.0
        %1234 = vmatprep.subr.mxu0 0.0
        %1235 = vmatpush1.msra.mxu0 0.0
        %1236 = vmatprep.subr.mxu0 0.0
        %1237 = vmatpush1.msra.mxu0 0.0
        %1238 = vmatprep.subr.mxu0 0.0
        %1239 = vmatpush1.msra.mxu0 0.0
        %1240 = vmatprep.subr.mxu0 0.0
        %1241 = vmatpush1.msra.mxu0 0.0
        %1242 = vmatprep.subr.mxu0 0.0
        %1243 = vmatpush1.msra.mxu0 0.0
        %1244 = vmatprep.subr.mxu0 0.0
        %1245 = vmatpush1.msra.mxu0 0.0
        %1246 = vmatprep.subr.mxu0 0.0
        %1247 = vmatpush1.msra.mxu0 0.0
        %1248 = vmatprep.subr.mxu0 0.0
        %1249 = vmatpush1.msra.mxu0 0.0
        %1250 = vmatprep.subr.mxu0 0.0
        %1251 = vmatpush1.msra.mxu0 0.0
        %1252 = vmatprep.subr.mxu0 0.0
        %1253 = vmatpush1.msra.mxu0 0.0
        %1254 = vmatprep.subr.mxu0 0.0
        %1255 = vmatpush1.msra.mxu0 0.0
        %1256 = vmatprep.subr.mxu0 0.0
        %1257 = vmatpush1.msra.mxu0 0.0
        %1258 = vmatprep.subr.mxu0 0.0
        %1259 = vmatpush1.msra.mxu0 0.0
        %1260 = vmatprep.subr.mxu0 0.0
        %1261 = vmatpush1.msra.mxu0 0.0
        %1262 = vmatprep.subr.mxu0 0.0
        %1263 = vmatpush1.msra.mxu0 0.0
        %1264 = vmatprep.subr.mxu0 0.0
        %1265 = vmatpush1.msra.mxu0 0.0
        %1266 = vmatprep.subr.mxu0 0.0
        %1267 = vmatpush1.msra.mxu0 0.0
        %1268 = vmatprep.subr.mxu0 0.0
        %1269 = vmatpush1.msra.mxu0 0.0
        %1270 = vmatprep.subr.mxu0 0.0
        %1271 = vmatpush1.msra.mxu0 0.0
        %1272 = vmatprep.subr.mxu0 0.0
        %1273 = vmatpush1.msra.mxu0 0.0
        %1274 = vmatprep.subr.mxu0 0.0
        %1275 = vmatpush1.msra.mxu0 0.0
        %1276 = vmatprep.subr.mxu0 0.0
        %1277 = vmatpush1.msra.mxu0 0.0
        %1278 = vmatprep.subr.mxu0 0.0
        %1279 = vmatpush1.msra.mxu0 0.0
        %1280 = vmatprep.subr.mxu0 0.0
        %1281 = vmatpush1.msra.mxu0 0.0
        %1282 = vmatprep.mubr.f32.mxu0 0.0
        %1283 = vmatmul.mubr.f32.gmra.mrb[0].mxu0 %v1216
        %v1284 = vpop.f32.mrb[0].mxu0
        %v1285 = vadd.f32 %v1211, %v1284
        %v1286 = vpop.f32.mrb[0].mxu0
        %v1287 = vadd.f32 %v1213, %v1286
        %1288 = vdwg.mxu0
        %1289 = vrot.lane.b32.xlu0 %v1128, 16
        %v1290 = vpop.permute.xlu0 %1289
        %1291 = vrot.lane.b32.xlu0 %v1129, 16
        %v1292 = vpop.permute.xlu0 %1291
        %v1293 = vsel %vm438, %v1290, %v1292
        %v1294 = vsel %vm438, %v1292, %v1290
        %v1295 = vmul.f32 %v1294, %v445
        %v1296 = vmul.f32 %v1293, %v449
        %s1297 = scalar_lea.vmem %s4, 8
        %v1298 = vld [vmem:[%s1297] sm:$0xff]
        %v1300 = vsel %vm285, %v1298, 0
        %1302 = vmatprep.subr.mxu0 %v1296
        %1303 = vmatpush1.msra.mxu0 %v1295
        %1304 = vmatprep.subr.mxu0 0.0
        %1305 = vmatpush1.msra.mxu0 0.0
        %1306 = vmatprep.subr.mxu0 0.0
        %1307 = vmatpush1.msra.mxu0 0.0
        %1308 = vmatprep.subr.mxu0 0.0
        %1309 = vmatpush1.msra.mxu0 0.0
        %1310 = vmatprep.subr.mxu0 0.0
        %1311 = vmatpush1.msra.mxu0 0.0
        %1312 = vmatprep.subr.mxu0 0.0
        %1313 = vmatpush1.msra.mxu0 0.0
        %1314 = vmatprep.subr.mxu0 0.0
        %1315 = vmatpush1.msra.mxu0 0.0
        %1316 = vmatprep.subr.mxu0 0.0
        %1317 = vmatpush1.msra.mxu0 0.0
        %1318 = vmatprep.subr.mxu0 0.0
        %1319 = vmatpush1.msra.mxu0 0.0
        %1320 = vmatprep.subr.mxu0 0.0
        %1321 = vmatpush1.msra.mxu0 0.0
        %1322 = vmatprep.subr.mxu0 0.0
        %1323 = vmatpush1.msra.mxu0 0.0
        %1324 = vmatprep.subr.mxu0 0.0
        %1325 = vmatpush1.msra.mxu0 0.0
        %1326 = vmatprep.subr.mxu0 0.0
        %1327 = vmatpush1.msra.mxu0 0.0
        %1328 = vmatprep.subr.mxu0 0.0
        %1329 = vmatpush1.msra.mxu0 0.0
        %1330 = vmatprep.subr.mxu0 0.0
        %1331 = vmatpush1.msra.mxu0 0.0
        %1332 = vmatprep.subr.mxu0 0.0
        %1333 = vmatpush1.msra.mxu0 0.0
        %1334 = vmatprep.subr.mxu0 0.0
        %1335 = vmatpush1.msra.mxu0 0.0
        %1336 = vmatprep.subr.mxu0 0.0
        %1337 = vmatpush1.msra.mxu0 0.0
        %1338 = vmatprep.subr.mxu0 0.0
        %1339 = vmatpush1.msra.mxu0 0.0
        %1340 = vmatprep.subr.mxu0 0.0
        %1341 = vmatpush1.msra.mxu0 0.0
        %1342 = vmatprep.subr.mxu0 0.0
        %1343 = vmatpush1.msra.mxu0 0.0
        %1344 = vmatprep.subr.mxu0 0.0
        %1345 = vmatpush1.msra.mxu0 0.0
        %1346 = vmatprep.subr.mxu0 0.0
        %1347 = vmatpush1.msra.mxu0 0.0
        %1348 = vmatprep.subr.mxu0 0.0
        %1349 = vmatpush1.msra.mxu0 0.0
        %1350 = vmatprep.subr.mxu0 0.0
        %1351 = vmatpush1.msra.mxu0 0.0
        %1352 = vmatprep.subr.mxu0 0.0
        %1353 = vmatpush1.msra.mxu0 0.0
        %1354 = vmatprep.subr.mxu0 0.0
        %1355 = vmatpush1.msra.mxu0 0.0
        %1356 = vmatprep.subr.mxu0 0.0
        %1357 = vmatpush1.msra.mxu0 0.0
        %1358 = vmatprep.subr.mxu0 0.0
        %1359 = vmatpush1.msra.mxu0 0.0
        %1360 = vmatprep.subr.mxu0 0.0
        %1361 = vmatpush1.msra.mxu0 0.0
        %1362 = vmatprep.subr.mxu0 0.0
        %1363 = vmatpush1.msra.mxu0 0.0
        %1364 = vmatprep.subr.mxu0 0.0
        %1365 = vmatpush1.msra.mxu0 0.0
        %1366 = vmatprep.mubr.f32.mxu0 0.0
        %1367 = vmatmul.mubr.f32.gmra.mrb[0].mxu0 %v1300
        %v1368 = vpop.f32.mrb[0].mxu0
        %v1369 = vadd.f32 0.0, %v1368
        %v1370 = vpop.f32.mrb[0].mxu0
        %v1371 = vadd.f32 0.0, %v1370
        %1372 = vdwg.mxu0
        %v1373 = vadd.f32 %v1285, %v1369
        %v1374 = vadd.f32 %v1287, %v1371
        %1375 = vrot.lane.b32.xlu0 %v1128, 15
        %v1376 = vpop.permute.xlu0 %1375
        %1377 = vrot.lane.b32.xlu0 %v1129, 15
        %v1378 = vpop.permute.xlu0 %1377
        %v1379 = vsel %vm536, %v1376, %v1378
        %v1380 = vsel %vm536, %v1378, %v1376
        %v1381 = vmul.f32 %v1380, %v543
        %v1382 = vmul.f32 %v1379, %v547
        %s1383 = scalar_lea.vmem %s4, 16
        %v1384 = vld [vmem:[%s1383] sm:$0xff]
        %v1386 = vsel %vm285, %v1384, 0
        %1388 = vmatprep.subr.mxu0 %v1382
        %1389 = vmatpush1.msra.mxu0 %v1381
        %1390 = vmatprep.subr.mxu0 0.0
        %1391 = vmatpush1.msra.mxu0 0.0
        %1392 = vmatprep.subr.mxu0 0.0
        %1393 = vmatpush1.msra.mxu0 0.0
        %1394 = vmatprep.subr.mxu0 0.0
        %1395 = vmatpush1.msra.mxu0 0.0
        %1396 = vmatprep.subr.mxu0 0.0
        %1397 = vmatpush1.msra.mxu0 0.0
        %1398 = vmatprep.subr.mxu0 0.0
        %1399 = vmatpush1.msra.mxu0 0.0
        %1400 = vmatprep.subr.mxu0 0.0
        %1401 = vmatpush1.msra.mxu0 0.0
        %1402 = vmatprep.subr.mxu0 0.0
        %1403 = vmatpush1.msra.mxu0 0.0
        %1404 = vmatprep.subr.mxu0 0.0
        %1405 = vmatpush1.msra.mxu0 0.0
        %1406 = vmatprep.subr.mxu0 0.0
        %1407 = vmatpush1.msra.mxu0 0.0
        %1408 = vmatprep.subr.mxu0 0.0
        %1409 = vmatpush1.msra.mxu0 0.0
        %1410 = vmatprep.subr.mxu0 0.0
        %1411 = vmatpush1.msra.mxu0 0.0
        %1412 = vmatprep.subr.mxu0 0.0
        %1413 = vmatpush1.msra.mxu0 0.0
        %1414 = vmatprep.subr.mxu0 0.0
        %1415 = vmatpush1.msra.mxu0 0.0
        %1416 = vmatprep.subr.mxu0 0.0
        %1417 = vmatpush1.msra.mxu0 0.0
        %1418 = vmatprep.subr.mxu0 0.0
        %1419 = vmatpush1.msra.mxu0 0.0
        %1420 = vmatprep.subr.mxu0 0.0
        %1421 = vmatpush1.msra.mxu0 0.0
        %1422 = vmatprep.subr.mxu0 0.0
        %1423 = vmatpush1.msra.mxu0 0.0
        %1424 = vmatprep.subr.mxu0 0.0
        %1425 = vmatpush1.msra.mxu0 0.0
        %1426 = vmatprep.subr.mxu0 0.0
        %1427 = vmatpush1.msra.mxu0 0.0
        %1428 = vmatprep.subr.mxu0 0.0
        %1429 = vmatpush1.msra.mxu0 0.0
        %1430 = vmatprep.subr.mxu0 0.0
        %1431 = vmatpush1.msra.mxu0 0.0
        %1432 = vmatprep.subr.mxu0 0.0
        %1433 = vmatpush1.msra.mxu0 0.0
        %1434 = vmatprep.subr.mxu0 0.0
        %1435 = vmatpush1.msra.mxu0 0.0
        %1436 = vmatprep.subr.mxu0 0.0
        %1437 = vmatpush1.msra.mxu0 0.0
        %1438 = vmatprep.subr.mxu0 0.0
        %1439 = vmatpush1.msra.mxu0 0.0
        %1440 = vmatprep.subr.mxu0 0.0
        %1441 = vmatpush1.msra.mxu0 0.0
        %1442 = vmatprep.subr.mxu0 0.0
        %1443 = vmatpush1.msra.mxu0 0.0
        %1444 = vmatprep.subr.mxu0 0.0
        %1445 = vmatpush1.msra.mxu0 0.0
        %1446 = vmatprep.subr.mxu0 0.0
        %1447 = vmatpush1.msra.mxu0 0.0
        %1448 = vmatprep.subr.mxu0 0.0
        %1449 = vmatpush1.msra.mxu0 0.0
        %1450 = vmatprep.subr.mxu0 0.0
        %1451 = vmatpush1.msra.mxu0 0.0
        %1452 = vmatprep.mubr.f32.mxu0 0.0
        %1453 = vmatmul.mubr.f32.gmra.mrb[0].mxu0 %v1386
        %v1454 = vpop.f32.mrb[0].mxu0
        %v1455 = vadd.f32 0.0, %v1454
        %v1456 = vpop.f32.mrb[0].mxu0
        %v1457 = vadd.f32 0.0, %v1456
        %1458 = vdwg.mxu0
        %v1459 = vadd.f32 %v1373, %v1455
        %v1460 = vadd.f32 %v1374, %v1457
        %1461 = vrot.lane.b32.xlu0 %v1128, 1
        %v1462 = vpop.permute.xlu0 %1461
        %1463 = vrot.lane.b32.xlu0 %v1129, 1
        %v1464 = vpop.permute.xlu0 %1463
        %v1465 = vsel %vm634, %v1462, %v1464
        %v1466 = vsel %vm634, %v1464, %v1462
        %v1467 = vmul.f32 %v1466, %v641
        %v1468 = vmul.f32 %v1465, %v645
        %s1469 = scalar_lea.vmem %s4, 24
        %v1470 = vld [vmem:[%s1469] sm:$0xff]
        %v1472 = vsel %vm285, %v1470, 0
        %1474 = vmatprep.subr.mxu0 %v1468
        %1475 = vmatpush1.msra.mxu0 %v1467
        %1476 = vmatprep.subr.mxu0 0.0
        %1477 = vmatpush1.msra.mxu0 0.0
        %1478 = vmatprep.subr.mxu0 0.0
        %1479 = vmatpush1.msra.mxu0 0.0
        %1480 = vmatprep.subr.mxu0 0.0
        %1481 = vmatpush1.msra.mxu0 0.0
        %1482 = vmatprep.subr.mxu0 0.0
        %1483 = vmatpush1.msra.mxu0 0.0
        %1484 = vmatprep.subr.mxu0 0.0
        %1485 = vmatpush1.msra.mxu0 0.0
        %1486 = vmatprep.subr.mxu0 0.0
        %1487 = vmatpush1.msra.mxu0 0.0
        %1488 = vmatprep.subr.mxu0 0.0
        %1489 = vmatpush1.msra.mxu0 0.0
        %1490 = vmatprep.subr.mxu0 0.0
        %1491 = vmatpush1.msra.mxu0 0.0
        %1492 = vmatprep.subr.mxu0 0.0
        %1493 = vmatpush1.msra.mxu0 0.0
        %1494 = vmatprep.subr.mxu0 0.0
        %1495 = vmatpush1.msra.mxu0 0.0
        %1496 = vmatprep.subr.mxu0 0.0
        %1497 = vmatpush1.msra.mxu0 0.0
        %1498 = vmatprep.subr.mxu0 0.0
        %1499 = vmatpush1.msra.mxu0 0.0
        %1500 = vmatprep.subr.mxu0 0.0
        %1501 = vmatpush1.msra.mxu0 0.0
        %1502 = vmatprep.subr.mxu0 0.0
        %1503 = vmatpush1.msra.mxu0 0.0
        %1504 = vmatprep.subr.mxu0 0.0
        %1505 = vmatpush1.msra.mxu0 0.0
        %1506 = vmatprep.subr.mxu0 0.0
        %1507 = vmatpush1.msra.mxu0 0.0
        %1508 = vmatprep.subr.mxu0 0.0
        %1509 = vmatpush1.msra.mxu0 0.0
        %1510 = vmatprep.subr.mxu0 0.0
        %1511 = vmatpush1.msra.mxu0 0.0
        %1512 = vmatprep.subr.mxu0 0.0
        %1513 = vmatpush1.msra.mxu0 0.0
        %1514 = vmatprep.subr.mxu0 0.0
        %1515 = vmatpush1.msra.mxu0 0.0
        %1516 = vmatprep.subr.mxu0 0.0
        %1517 = vmatpush1.msra.mxu0 0.0
        %1518 = vmatprep.subr.mxu0 0.0
        %1519 = vmatpush1.msra.mxu0 0.0
        %1520 = vmatprep.subr.mxu0 0.0
        %1521 = vmatpush1.msra.mxu0 0.0
        %1522 = vmatprep.subr.mxu0 0.0
        %1523 = vmatpush1.msra.mxu0 0.0
        %1524 = vmatprep.subr.mxu0 0.0
        %1525 = vmatpush1.msra.mxu0 0.0
        %1526 = vmatprep.subr.mxu0 0.0
        %1527 = vmatpush1.msra.mxu0 0.0
        %1528 = vmatprep.subr.mxu0 0.0
        %1529 = vmatpush1.msra.mxu0 0.0
        %1530 = vmatprep.subr.mxu0 0.0
        %1531 = vmatpush1.msra.mxu0 0.0
        %1532 = vmatprep.subr.mxu0 0.0
        %1533 = vmatpush1.msra.mxu0 0.0
        %1534 = vmatprep.subr.mxu0 0.0
        %1535 = vmatpush1.msra.mxu0 0.0
        %1536 = vmatprep.subr.mxu0 0.0
        %1537 = vmatpush1.msra.mxu0 0.0
        %1538 = vmatprep.mubr.f32.mxu0 0.0
        %1539 = vmatmul.mubr.f32.gmra.mrb[0].mxu0 %v1472
        %v1540 = vpop.f32.mrb[0].mxu0
        %v1541 = vadd.f32 0.0, %v1540
        %v1542 = vpop.f32.mrb[0].mxu0
        %v1543 = vadd.f32 0.0, %v1542
        %1544 = vdwg.mxu0
        %v1545 = vadd.f32 %v1459, %v1541
        %v1546 = vadd.f32 %v1460, %v1543
        %1547 = vrot.lane.b32.xlu0 %v1128, 127
        %v1548 = vpop.permute.xlu0 %1547
        %1549 = vrot.lane.b32.xlu0 %v1129, 127
        %v1550 = vpop.permute.xlu0 %1549
        %v1551 = vsel %vm732, %v1548, %v1550
        %v1552 = vsel %vm732, %v1550, %v1548
        %v1553 = vmul.f32 %v1551, %v739
        %v1554 = vmul.f32 %v1552, %v743
        %s1555 = scalar_lea.vmem %s4, 40
        %v1556 = vld [vmem:[%s1555] sm:$0xff]
        %v1558 = vsel %vm285, %v1556, 0
        %1560 = vmatprep.subr.mxu0 %v1554
        %1561 = vmatpush1.msra.mxu0 %v1553
        %1562 = vmatprep.subr.mxu0 0.0
        %1563 = vmatpush1.msra.mxu0 0.0
        %1564 = vmatprep.subr.mxu0 0.0
        %1565 = vmatpush1.msra.mxu0 0.0
        %1566 = vmatprep.subr.mxu0 0.0
        %1567 = vmatpush1.msra.mxu0 0.0
        %1568 = vmatprep.subr.mxu0 0.0
        %1569 = vmatpush1.msra.mxu0 0.0
        %1570 = vmatprep.subr.mxu0 0.0
        %1571 = vmatpush1.msra.mxu0 0.0
        %1572 = vmatprep.subr.mxu0 0.0
        %1573 = vmatpush1.msra.mxu0 0.0
        %1574 = vmatprep.subr.mxu0 0.0
        %1575 = vmatpush1.msra.mxu0 0.0
        %1576 = vmatprep.subr.mxu0 0.0
        %1577 = vmatpush1.msra.mxu0 0.0
        %1578 = vmatprep.subr.mxu0 0.0
        %1579 = vmatpush1.msra.mxu0 0.0
        %1580 = vmatprep.subr.mxu0 0.0
        %1581 = vmatpush1.msra.mxu0 0.0
        %1582 = vmatprep.subr.mxu0 0.0
        %1583 = vmatpush1.msra.mxu0 0.0
        %1584 = vmatprep.subr.mxu0 0.0
        %1585 = vmatpush1.msra.mxu0 0.0
        %1586 = vmatprep.subr.mxu0 0.0
        %1587 = vmatpush1.msra.mxu0 0.0
        %1588 = vmatprep.subr.mxu0 0.0
        %1589 = vmatpush1.msra.mxu0 0.0
        %1590 = vmatprep.subr.mxu0 0.0
        %1591 = vmatpush1.msra.mxu0 0.0
        %1592 = vmatprep.subr.mxu0 0.0
        %1593 = vmatpush1.msra.mxu0 0.0
        %1594 = vmatprep.subr.mxu0 0.0
        %1595 = vmatpush1.msra.mxu0 0.0
        %1596 = vmatprep.subr.mxu0 0.0
        %1597 = vmatpush1.msra.mxu0 0.0
        %1598 = vmatprep.subr.mxu0 0.0
        %1599 = vmatpush1.msra.mxu0 0.0
        %1600 = vmatprep.subr.mxu0 0.0
        %1601 = vmatpush1.msra.mxu0 0.0
        %1602 = vmatprep.subr.mxu0 0.0
        %1603 = vmatpush1.msra.mxu0 0.0
        %1604 = vmatprep.subr.mxu0 0.0
        %1605 = vmatpush1.msra.mxu0 0.0
        %1606 = vmatprep.subr.mxu0 0.0
        %1607 = vmatpush1.msra.mxu0 0.0
        %1608 = vmatprep.subr.mxu0 0.0
        %1609 = vmatpush1.msra.mxu0 0.0
        %1610 = vmatprep.subr.mxu0 0.0
        %1611 = vmatpush1.msra.mxu0 0.0
        %1612 = vmatprep.subr.mxu0 0.0
        %1613 = vmatpush1.msra.mxu0 0.0
        %1614 = vmatprep.subr.mxu0 0.0
        %1615 = vmatpush1.msra.mxu0 0.0
        %1616 = vmatprep.subr.mxu0 0.0
        %1617 = vmatpush1.msra.mxu0 0.0
        %1618 = vmatprep.subr.mxu0 0.0
        %1619 = vmatpush1.msra.mxu0 0.0
        %1620 = vmatprep.subr.mxu0 0.0
        %1621 = vmatpush1.msra.mxu0 0.0
        %1622 = vmatprep.subr.mxu0 0.0
        %1623 = vmatpush1.msra.mxu0 0.0
        %1624 = vmatprep.mubr.f32.mxu0 0.0
        %1625 = vmatmul.mubr.f32.gmra.mrb[0].mxu0 %v1558
        %v1626 = vpop.f32.mrb[0].mxu0
        %v1627 = vadd.f32 0.0, %v1626
        %v1628 = vpop.f32.mrb[0].mxu0
        %v1629 = vadd.f32 0.0, %v1628
        %1630 = vdwg.mxu0
        %v1631 = vadd.f32 %v1545, %v1627
        %v1632 = vadd.f32 %v1546, %v1629
        %1633 = vrot.lane.b32.xlu0 %v1128, 113
        %v1634 = vpop.permute.xlu0 %1633
        %1635 = vrot.lane.b32.xlu0 %v1129, 113
        %v1636 = vpop.permute.xlu0 %1635
        %v1637 = vsel %vm830, %v1634, %v1636
        %v1638 = vsel %vm830, %v1636, %v1634
        %v1639 = vmul.f32 %v1637, %v837
        %v1640 = vmul.f32 %v1638, %v841
        %s1641 = scalar_lea.vmem %s4, 48
        %v1642 = vld [vmem:[%s1641] sm:$0xff]
        %v1644 = vsel %vm285, %v1642, 0
        %1646 = vmatprep.subr.mxu0 %v1640
        %1647 = vmatpush1.msra.mxu0 %v1639
        %1648 = vmatprep.subr.mxu0 0.0
        %1649 = vmatpush1.msra.mxu0 0.0
        %1650 = vmatprep.subr.mxu0 0.0
        %1651 = vmatpush1.msra.mxu0 0.0
        %1652 = vmatprep.subr.mxu0 0.0
        %1653 = vmatpush1.msra.mxu0 0.0
        %1654 = vmatprep.subr.mxu0 0.0
        %1655 = vmatpush1.msra.mxu0 0.0
        %1656 = vmatprep.subr.mxu0 0.0
        %1657 = vmatpush1.msra.mxu0 0.0
        %1658 = vmatprep.subr.mxu0 0.0
        %1659 = vmatpush1.msra.mxu0 0.0
        %1660 = vmatprep.subr.mxu0 0.0
        %1661 = vmatpush1.msra.mxu0 0.0
        %1662 = vmatprep.subr.mxu0 0.0
        %1663 = vmatpush1.msra.mxu0 0.0
        %1664 = vmatprep.subr.mxu0 0.0
        %1665 = vmatpush1.msra.mxu0 0.0
        %1666 = vmatprep.subr.mxu0 0.0
        %1667 = vmatpush1.msra.mxu0 0.0
        %1668 = vmatprep.subr.mxu0 0.0
        %1669 = vmatpush1.msra.mxu0 0.0
        %1670 = vmatprep.subr.mxu0 0.0
        %1671 = vmatpush1.msra.mxu0 0.0
        %1672 = vmatprep.subr.mxu0 0.0
        %1673 = vmatpush1.msra.mxu0 0.0
        %1674 = vmatprep.subr.mxu0 0.0
        %1675 = vmatpush1.msra.mxu0 0.0
        %1676 = vmatprep.subr.mxu0 0.0
        %1677 = vmatpush1.msra.mxu0 0.0
        %1678 = vmatprep.subr.mxu0 0.0
        %1679 = vmatpush1.msra.mxu0 0.0
        %1680 = vmatprep.subr.mxu0 0.0
        %1681 = vmatpush1.msra.mxu0 0.0
        %1682 = vmatprep.subr.mxu0 0.0
        %1683 = vmatpush1.msra.mxu0 0.0
        %1684 = vmatprep.subr.mxu0 0.0
        %1685 = vmatpush1.msra.mxu0 0.0
        %1686 = vmatprep.subr.mxu0 0.0
        %1687 = vmatpush1.msra.mxu0 0.0
        %1688 = vmatprep.subr.mxu0 0.0
        %1689 = vmatpush1.msra.mxu0 0.0
        %1690 = vmatprep.subr.mxu0 0.0
        %1691 = vmatpush1.msra.mxu0 0.0
        %1692 = vmatprep.subr.mxu0 0.0
        %1693 = vmatpush1.msra.mxu0 0.0
        %1694 = vmatprep.subr.mxu0 0.0
        %1695 = vmatpush1.msra.mxu0 0.0
        %1696 = vmatprep.subr.mxu0 0.0
        %1697 = vmatpush1.msra.mxu0 0.0
        %1698 = vmatprep.subr.mxu0 0.0
        %1699 = vmatpush1.msra.mxu0 0.0
        %1700 = vmatprep.subr.mxu0 0.0
        %1701 = vmatpush1.msra.mxu0 0.0
        %1702 = vmatprep.subr.mxu0 0.0
        %1703 = vmatpush1.msra.mxu0 0.0
        %1704 = vmatprep.subr.mxu0 0.0
        %1705 = vmatpush1.msra.mxu0 0.0
        %1706 = vmatprep.subr.mxu0 0.0
        %1707 = vmatpush1.msra.mxu0 0.0
        %1708 = vmatprep.subr.mxu0 0.0
        %1709 = vmatpush1.msra.mxu0 0.0
        %1710 = vmatprep.mubr.f32.mxu0 0.0
        %1711 = vmatmul.mubr.f32.gmra.mrb[0].mxu0 %v1644
        %v1712 = vpop.f32.mrb[0].mxu0
        %v1713 = vadd.f32 0.0, %v1712
        %v1714 = vpop.f32.mrb[0].mxu0
        %v1715 = vadd.f32 0.0, %v1714
        %1716 = vdwg.mxu0
        %v1717 = vadd.f32 %v1631, %v1713
        %v1718 = vadd.f32 %v1632, %v1715
        %1719 = vrot.lane.b32.xlu0 %v1128, 112
        %v1720 = vpop.permute.xlu0 %1719
        %1721 = vrot.lane.b32.xlu0 %v1129, 112
        %v1722 = vpop.permute.xlu0 %1721
        %v1723 = vsel %vm928, %v1720, %v1722
        %v1724 = vsel %vm928, %v1722, %v1720
        %v1725 = vmul.f32 %v1723, %v935
        %v1726 = vmul.f32 %v1724, %v939
        %s1727 = scalar_lea.vmem %s4, 56
        %v1728 = vld [vmem:[%s1727] sm:$0xff]
        %v1730 = vsel %vm285, %v1728, 0
        %1732 = vmatprep.subr.mxu0 %v1726
        %1733 = vmatpush1.msra.mxu0 %v1725
        %1734 = vmatprep.subr.mxu0 0.0
        %1735 = vmatpush1.msra.mxu0 0.0
        %1736 = vmatprep.subr.mxu0 0.0
        %1737 = vmatpush1.msra.mxu0 0.0
        %1738 = vmatprep.subr.mxu0 0.0
        %1739 = vmatpush1.msra.mxu0 0.0
        %1740 = vmatprep.subr.mxu0 0.0
        %1741 = vmatpush1.msra.mxu0 0.0
        %1742 = vmatprep.subr.mxu0 0.0
        %1743 = vmatpush1.msra.mxu0 0.0
        %1744 = vmatprep.subr.mxu0 0.0
        %1745 = vmatpush1.msra.mxu0 0.0
        %1746 = vmatprep.subr.mxu0 0.0
        %1747 = vmatpush1.msra.mxu0 0.0
        %1748 = vmatprep.subr.mxu0 0.0
        %1749 = vmatpush1.msra.mxu0 0.0
        %1750 = vmatprep.subr.mxu0 0.0
        %1751 = vmatpush1.msra.mxu0 0.0
        %1752 = vmatprep.subr.mxu0 0.0
        %1753 = vmatpush1.msra.mxu0 0.0
        %1754 = vmatprep.subr.mxu0 0.0
        %1755 = vmatpush1.msra.mxu0 0.0
        %1756 = vmatprep.subr.mxu0 0.0
        %1757 = vmatpush1.msra.mxu0 0.0
        %1758 = vmatprep.subr.mxu0 0.0
        %1759 = vmatpush1.msra.mxu0 0.0
        %1760 = vmatprep.subr.mxu0 0.0
        %1761 = vmatpush1.msra.mxu0 0.0
        %1762 = vmatprep.subr.mxu0 0.0
        %1763 = vmatpush1.msra.mxu0 0.0
        %1764 = vmatprep.subr.mxu0 0.0
        %1765 = vmatpush1.msra.mxu0 0.0
        %1766 = vmatprep.subr.mxu0 0.0
        %1767 = vmatpush1.msra.mxu0 0.0
        %1768 = vmatprep.subr.mxu0 0.0
        %1769 = vmatpush1.msra.mxu0 0.0
        %1770 = vmatprep.subr.mxu0 0.0
        %1771 = vmatpush1.msra.mxu0 0.0
        %1772 = vmatprep.subr.mxu0 0.0
        %1773 = vmatpush1.msra.mxu0 0.0
        %1774 = vmatprep.subr.mxu0 0.0
        %1775 = vmatpush1.msra.mxu0 0.0
        %1776 = vmatprep.subr.mxu0 0.0
        %1777 = vmatpush1.msra.mxu0 0.0
        %1778 = vmatprep.subr.mxu0 0.0
        %1779 = vmatpush1.msra.mxu0 0.0
        %1780 = vmatprep.subr.mxu0 0.0
        %1781 = vmatpush1.msra.mxu0 0.0
        %1782 = vmatprep.subr.mxu0 0.0
        %1783 = vmatpush1.msra.mxu0 0.0
        %1784 = vmatprep.subr.mxu0 0.0
        %1785 = vmatpush1.msra.mxu0 0.0
        %1786 = vmatprep.subr.mxu0 0.0
        %1787 = vmatpush1.msra.mxu0 0.0
        %1788 = vmatprep.subr.mxu0 0.0
        %1789 = vmatpush1.msra.mxu0 0.0
        %1790 = vmatprep.subr.mxu0 0.0
        %1791 = vmatpush1.msra.mxu0 0.0
        %1792 = vmatprep.subr.mxu0 0.0
        %1793 = vmatpush1.msra.mxu0 0.0
        %1794 = vmatprep.subr.mxu0 0.0
        %1795 = vmatpush1.msra.mxu0 0.0
        %1796 = vmatprep.mubr.f32.mxu0 0.0
        %1797 = vmatmul.mubr.f32.gmra.mrb[0].mxu0 %v1730
        %v1798 = vpop.f32.mrb[0].mxu0
        %v1799 = vadd.f32 0.0, %v1798
        %v1800 = vpop.f32.mrb[0].mxu0
        %v1801 = vadd.f32 0.0, %v1800
        %1802 = vdwg.mxu0
        %v1803 = vadd.f32 %v1717, %v1799
        %v1804 = vadd.f32 %v1718, %v1801
        %1805 = vrot.lane.b32.xlu0 %v1128, 111
        %v1806 = vpop.permute.xlu0 %1805
        %1807 = vrot.lane.b32.xlu0 %v1129, 111
        %v1808 = vpop.permute.xlu0 %1807
        %v1809 = vsel %vm1026, %v1806, %v1808
        %v1810 = vsel %vm1026, %v1808, %v1806
        %v1811 = vmul.f32 %v1809, %v1033
        %v1812 = vmul.f32 %v1810, %v1037
        %s1813 = scalar_lea.vmem %s4, 64
        %v1814 = vld [vmem:[%s1813] sm:$0xff]
        %v1816 = vsel %vm285, %v1814, 0
        %1818 = vmatprep.subr.mxu0 %v1812
        %1819 = vmatpush1.msra.mxu0 %v1811
        %1820 = vmatprep.subr.mxu0 0.0
        %1821 = vmatpush1.msra.mxu0 0.0
        %1822 = vmatprep.subr.mxu0 0.0
        %1823 = vmatpush1.msra.mxu0 0.0
        %1824 = vmatprep.subr.mxu0 0.0
        %1825 = vmatpush1.msra.mxu0 0.0
        %1826 = vmatprep.subr.mxu0 0.0
        %1827 = vmatpush1.msra.mxu0 0.0
        %1828 = vmatprep.subr.mxu0 0.0
        %1829 = vmatpush1.msra.mxu0 0.0
        %1830 = vmatprep.subr.mxu0 0.0
        %1831 = vmatpush1.msra.mxu0 0.0
        %1832 = vmatprep.subr.mxu0 0.0
        %1833 = vmatpush1.msra.mxu0 0.0
        %1834 = vmatprep.subr.mxu0 0.0
        %1835 = vmatpush1.msra.mxu0 0.0
        %1836 = vmatprep.subr.mxu0 0.0
        %1837 = vmatpush1.msra.mxu0 0.0
        %1838 = vmatprep.subr.mxu0 0.0
        %1839 = vmatpush1.msra.mxu0 0.0
        %1840 = vmatprep.subr.mxu0 0.0
        %1841 = vmatpush1.msra.mxu0 0.0
        %1842 = vmatprep.subr.mxu0 0.0
        %1843 = vmatpush1.msra.mxu0 0.0
        %1844 = vmatprep.subr.mxu0 0.0
        %1845 = vmatpush1.msra.mxu0 0.0
        %1846 = vmatprep.subr.mxu0 0.0
        %1847 = vmatpush1.msra.mxu0 0.0
        %1848 = vmatprep.subr.mxu0 0.0
        %1849 = vmatpush1.msra.mxu0 0.0
        %1850 = vmatprep.subr.mxu0 0.0
        %1851 = vmatpush1.msra.mxu0 0.0
        %1852 = vmatprep.subr.mxu0 0.0
        %1853 = vmatpush1.msra.mxu0 0.0
        %1854 = vmatprep.subr.mxu0 0.0
        %1855 = vmatpush1.msra.mxu0 0.0
        %1856 = vmatprep.subr.mxu0 0.0
        %1857 = vmatpush1.msra.mxu0 0.0
        %1858 = vmatprep.subr.mxu0 0.0
        %1859 = vmatpush1.msra.mxu0 0.0
        %1860 = vmatprep.subr.mxu0 0.0
        %1861 = vmatpush1.msra.mxu0 0.0
        %1862 = vmatprep.subr.mxu0 0.0
        %1863 = vmatpush1.msra.mxu0 0.0
        %1864 = vmatprep.subr.mxu0 0.0
        %1865 = vmatpush1.msra.mxu0 0.0
        %1866 = vmatprep.subr.mxu0 0.0
        %1867 = vmatpush1.msra.mxu0 0.0
        %1868 = vmatprep.subr.mxu0 0.0
        %1869 = vmatpush1.msra.mxu0 0.0
        %1870 = vmatprep.subr.mxu0 0.0
        %1871 = vmatpush1.msra.mxu0 0.0
        %1872 = vmatprep.subr.mxu0 0.0
        %1873 = vmatpush1.msra.mxu0 0.0
        %1874 = vmatprep.subr.mxu0 0.0
        %1875 = vmatpush1.msra.mxu0 0.0
        %1876 = vmatprep.subr.mxu0 0.0
        %1877 = vmatpush1.msra.mxu0 0.0
        %1878 = vmatprep.subr.mxu0 0.0
        %1879 = vmatpush1.msra.mxu0 0.0
        %1880 = vmatprep.subr.mxu0 0.0
        %1881 = vmatpush1.msra.mxu0 0.0
        %1882 = vmatprep.mubr.f32.mxu0 0.0
        %1883 = vmatmul.mubr.f32.gmra.mrb[0].mxu0 %v1816
        %v1884 = vpop.f32.mrb[0].mxu0
        %v1885 = vadd.f32 0.0, %v1884
        %v1886 = vpop.f32.mrb[0].mxu0
        %v1887 = vadd.f32 0.0, %v1886
        %1888 = vdwg.mxu0
        %v1889 = vadd.f32 %v1803, %v1885
        %v1890 = vadd.f32 %v1804, %v1887
        %v1891 = vld [vmem:[%s5] sm:$0xff]
        %1893 = vset.pattern.permute.xlu0 0
        %1894 = vperm.xlu0 %1893, %v1891
        %v1895 = vpop.permute.xlu0 %1894
        %v1897 = vadd.f32 %v1889, %v1895
        %v1898 = vadd.f32 %v1890, %v1895
        %v1899 = vadd.f32 %v1897, %v258
        %v1900 = vadd.f32 %v1898, %v259
        %v1901 = vmax.f32 %v1899, 0.0
        %v1902 = vmax.f32 %v1900, 0.0
        %1903 = vst [vmem:[%s244] sm:$0xff] %v1901
        %1904 = vst [vmem:[%s244 + $0x8] sm:$0xff] %v1902
        %s1905 = sand.u32 %s159, 1
        %s1906 = scalar_lea.sflag [#allocation3], %s1905
        %s1907 = sand.u32 %s159, 1
        %s1908 = smul.addr %s1907, 16
        %s1909 = scalar_lea.vmem [#allocation2], %s1908
        // Predicated region
        $region45: #{tpu_custom_call.1} parent=43 // pred_check
          %p1910 = pneg %p169
        $region46: #{tpu_custom_call.1} parent=43 // pred_check_branch
          %1912 = sbr.rel (%p1910) target = $region48
        $region47: #{tpu_custom_call.1} parent=43 // pred_region
          %s1914 = ssub.s32 256, 256
          %1915 = vsyncadd %s1906, %s1914
          %s1916 = smul.addr %s20, 2
          %s1917 = smul.addr %s1916, 128
          %s1918 = scalar_lea.hbm %s6, %s1917
          %s1920 = sshll.u32 %s1909, 4
          %s1921 = int_to_ptr.vmem [resolvable:$true] %s1920
          %1923 = dma.vmem_to_hbm [thread:$0]  %s1921, 256, %s1918, %s1906
        $region48: #{tpu_custom_call.1} parent=43 // pred_fallthru
          _
      $region44: #{tpu_custom_call.1} parent=5 // pred_fallthru
        _
      %p1924 = scmp.le.s32.totalorder 2, %s15
      // Predicated region
      $region49: #{tpu_custom_call.1} parent=5 // pred_check
        %p1925 = pneg %p1924
      $region50: #{tpu_custom_call.1} parent=5 // pred_check_branch
        %1927 = sbr.rel (%p1925) target = $region52
      $region51: #{tpu_custom_call.1} parent=5 // pred_region
        %s1928 = ssub.s32 %s15, 2
        // Predicated region
        $region53: #{tpu_custom_call.1} parent=51 // pred_check
          %p1929 = pneg %p175
        $region54: #{tpu_custom_call.1} parent=51 // pred_check_branch
          %1931 = sbr.rel (%p1929) target = $region56
        $region55: #{tpu_custom_call.1} parent=51 // pred_region
          %s1932 = sand.u32 %s160, 1
          %s1933 = scalar_lea.sflag [#allocation3], %s1932
          %s1934 = sand.u32 %s160, 1
          %s1935 = smul.addr %s1934, 16
          %s1936 = scalar_lea.vmem [#allocation2], %s1935
          %1937 = dma.done %s1933, 256
        $region56: #{tpu_custom_call.1} parent=51 // pred_fallthru
          _
      $region52: #{tpu_custom_call.1} parent=5 // pred_fallthru
        _
    $region6: #{tpu_custom_call.1} parent=1 // loop_footer
      %s19 = sadd.s32 1, %s15
    $region7: #{tpu_custom_call.1} parent=1 // loop_footer_branch
      %14 = sbr.rel target = $region3
    $region8: #{tpu_custom_call.1} parent=1 // loop_exit
      _
    %1938 = vsyncpa [#allocation3], 1
    %s1939 = scalar_lea.sflag [#allocation3], 1
    %1940 = vsyncpa %s1939, 1

</llo_original>
